<compile_context>
chip_gen: v6e
topology: v6e:2x2x1
jax: 0.10.0
libtpu: 0.0.40
codegen_flags: <defaults>
</compile_context>

<pallas_src>
import jax
import jax.numpy as jnp
from jax.experimental import pallas as pl
from jax.experimental.pallas import tpu as pltpu


# ------------------------------- static layout ------------------------------ #

def _round_up(x, m):
    return ((x + m - 1) // m) * m


def _default_elementwise_dtype():
    """bf16 pairwise-score math only on chips with a bf16 VPU (v6e/v7x)."""
    try:
        kind = jax.devices()[0].device_kind.lower()
    except Exception:
        return jnp.float32
    if "v6" in kind or "v7" in kind or "tpu7" in kind:
        return jnp.bfloat16
    return jnp.float32


def _layout(input_dim, hidden_dim, output_dim):
    """Static packing layout shared by prepare_params() and the kernel."""
    c = hidden_dim
    out_pad = _round_up(max(output_dim, 1), 128)          # lane-dense output
    lanes = max(128, _round_up(2 * c, 128), out_pad)      # slab lane width
    r_in = _round_up(input_dim, 16)                       # bf16 sublane packing
    r_h = _round_up(c, 16)
    w_offs, o = {}, 0
    for name, rows in (("conv1", r_in), ("conv2", r_h), ("conv5", r_h),
                       ("w1", r_h), ("w2", r_h), ("w3", r_h)):
        w_offs[name] = o
        o += rows
    v_offs = {"conv1": 0, "conv2": 3, "conv5": 6, "b1": 9, "b2": 10, "b3": 11}
    return dict(c=c, input_dim=input_dim, output_dim=output_dim,
                out_pad=out_pad, lanes=lanes, w_rows=o,
                v_rows=_round_up(12, 8), w_offs=w_offs, v_offs=v_offs)


# --------------------------------- kernel ----------------------------------- #

def _make_kernel(lo, ew_dt):
    c = lo["c"]
    c_in = lo["input_dim"]
    out_pad = lo["out_pad"]
    wo, vo = lo["w_offs"], lo["v_offs"]

    def gat_layer(x, adj, w_ref, v_ref, w_row, rows_in, v_row, do_relu):
        # merged [W_l ‖ W_r] -> one MXU matmul + one bias add per layer
        w = w_ref[w_row:w_row + rows_in, 0:2 * c]                    # bf16
        b_lr = v_ref[v_row:v_row + 1, 0:2 * c]
        att = v_ref[v_row + 1:v_row + 2, 0:c]
        bias = v_ref[v_row + 2:v_row + 3, 0:c]
        xlr = jnp.dot(x.astype(jnp.bfloat16), w,
                      preferred_element_type=jnp.float32) + b_lr      # [N, 2C]
        x_l = xlr[:, 0:c]
        x_r = xlr[:, c:2 * c]

        # pairwise edge features e[t, s, :] = leaky_relu(x_l[s] + x_r[t]).
        # bf16 on v6e/v7x halves the [N, N, C] vreg footprint; att reduction
        # accumulates in f32.
        e = x_l.astype(ew_dt)[None, :, :] + x_r.astype(ew_dt)[:, None, :]
        e = jnp.maximum(e, 0.2 * e)                                   # slope 0.2
        prod = (e * att.astype(ew_dt)[None, :, :]).astype(jnp.float32)
        scores = jnp.sum(prod, axis=-1)                               # [N_t, N_s]

        # masked softmax over incoming edges (add_self_loops=False, as in the
        # reference module). Masked max keeps exp() exact even if a non-edge
        # score dominates; `* adj` zeroes non-edges; isolated-target rows hit
        # the denom==0 fallback and reduce to bias-only (matches PyG).
        masked = jnp.where(adj > 0, scores, -1e9)
        row_max = jnp.max(masked, axis=1, keepdims=True)
        p = jnp.exp(masked - row_max) * adj
        denom = jnp.sum(p, axis=1, keepdims=True)
        inv = pl.reciprocal(jnp.where(denom > 0, denom, 1.0), approx=True)
        alpha = p * inv

        out = jnp.dot(alpha.astype(jnp.bfloat16), x_l.astype(jnp.bfloat16),
                      preferred_element_type=jnp.float32) + bias
        return jnp.maximum(out, 0.0) if do_relu else out

    def fc(h, w_ref, v_ref, w_row, v_row, cols, do_relu):
        w = w_ref[w_row:w_row + c, 0:cols]                            # bf16
        b = v_ref[v_row:v_row + 1, 0:cols]
        y = jnp.dot(h.astype(jnp.bfloat16), w,
                    preferred_element_type=jnp.float32) + b
        return jnp.maximum(y, 0.0) if do_relu else y

    def kernel(x_ref, adj_ref, w_ref, v_ref, out_ref):
        adj = adj_ref[...]                          # f32 0/1 mask, read once
        h = gat_layer(x_ref[...], adj, w_ref, v_ref, wo["conv1"], c_in,
                      vo["conv1"], True)
        h = gat_layer(h, adj, w_ref, v_ref, wo["conv2"], c, vo["conv2"], True)
        h = gat_layer(h, adj, w_ref, v_ref, wo["conv5"], c, vo["conv5"], False)
        # MLP: relu(fc1) -> relu(fc2) -> fc3 (w3/b3 pre-padded to 128 lanes,
        # so the final store is an unmasked lane-dense vst).
        h = fc(h, w_ref, v_ref, wo["w1"], vo["b1"], c, True)
        h = fc(h, w_ref, v_ref, wo["w2"], vo["b2"], c, True)
        out_ref[...] = fc(h, w_ref, v_ref, wo["w3"], vo["b3"], out_pad, False)

    return kernel


# ----------------------- one-time parameter packing -------------------------- #

def _pad_block(a, rows, lanes):
    r, cc = a.shape
    return jnp.pad(a, ((0, rows - r), (0, lanes - cc)))


def prepare_params(params):
    """One-time packing of every weight/bias into two VMEM slabs.

    Hoisted out of the jitted forward: no per-call casts / pads / concats.
    Returns (w_slab bf16 [rows, 128+], v_slab f32 [rows, 128+]).
    """
    input_dim, c = params["conv1"]["w_l"].shape
    output_dim = params["mlp"]["w3"].shape[1]
    lo = _layout(input_dim, c, output_dim)
    lanes = lo["lanes"]
    r_in = _round_up(input_dim, 16)
    r_h = _round_up(c, 16)

    def conv_w(p):                                   # [W_l ‖ W_r]
        return jnp.concatenate([p["w_l"], p["w_r"]], axis=1)

    m = params["mlp"]
    w_slab = jnp.concatenate([
        _pad_block(conv_w(params["conv1"]), r_in, lanes),
        _pad_block(conv_w(params["conv2"]), r_h, lanes),
        _pad_block(conv_w(params["conv5"]), r_h, lanes),
        _pad_block(m["w1"], r_h, lanes),
        _pad_block(m["w2"], r_h, lanes),
        _pad_block(m["w3"], r_h, lanes),
    ], axis=0).astype(jnp.bfloat16)
    assert w_slab.shape[0] == lo["w_rows"]

    def conv_vecs(p):
        return [_pad_block(jnp.concatenate([p["b_l"], p["b_r"]], axis=1), 1, lanes),
                _pad_block(p["att"], 1, lanes),
                _pad_block(p["bias"], 1, lanes)]

    v_rows = (conv_vecs(params["conv1"]) + conv_vecs(params["conv2"]) +
              conv_vecs(params["conv5"]) +
              [_pad_block(m["b1"], 1, lanes), _pad_block(m["b2"], 1, lanes),
               _pad_block(m["b3"], 1, lanes)])
    v_slab = jnp.concatenate(v_rows, axis=0)
    v_slab = jnp.pad(v_slab, ((0, lo["v_rows"] - v_slab.shape[0]), (0, 0)))
    return w_slab, v_slab


# ------------------------------ forward factory ------------------------------ #

def make_policy_net_forward(input_dim, hidden_dim, output_dim,
                            elementwise_dtype=None):
    lo = _layout(input_dim, hidden_dim, output_dim)
    ew_dt = (elementwise_dtype if elementwise_dtype is not None
             else _default_elementwise_dtype())
    kernel = _make_kernel(lo, ew_dt)
    vmem = pl.BlockSpec(memory_space=pltpu.MemorySpace.VMEM)

    # TODO(synk): to fill the MXU M-dim / use v7x's second TensorCore, batch
    # several graphs (block-diagonal adj or a leading grid axis with
    # dimension_semantics=("parallel",)). For large N, tile target rows with a
    # grid and set pltpu.CompilerParams(vmem_limit_bytes=...): the fused
    # [N, N, C] score tensor caps N at ~sqrt(VMEM / 4C), and v7x has only
    # 64 MiB of VMEM (half of v5e/v6e).
    @jax.jit
    def forward(x, adj, w_slab, v_slab):
        n = x.shape[0]
        return pl.pallas_call(
            kernel,
            out_shape=jax.ShapeDtypeStruct((n, lo["out_pad"]), jnp.float32),
            in_specs=[vmem, vmem, vmem, vmem],
            out_specs=vmem,
        )(x, adj, w_slab, v_slab)

    return forward


# ---------------------------- parameter helpers ------------------------------ #

def _glorot(key, shape):
    fan_in, fan_out = shape
    lim = jnp.sqrt(6.0 / (fan_in + fan_out))
    return jax.random.uniform(key, shape, jnp.float32, -lim, lim)


def init_gatv2_params(key, c_in, c_out):
    k1, k2, k3 = jax.random.split(key, 3)
    return {
        "w_l": _glorot(k1, (c_in, c_out)),
        "b_l": jnp.zeros((1, c_out), jnp.float32),
        "w_r": _glorot(k2, (c_in, c_out)),
        "b_r": jnp.zeros((1, c_out), jnp.float32),
        "att": _glorot(k3, (1, c_out)),
        "bias": jnp.zeros((1, c_out), jnp.float32),
    }


def init_mlp_params(key, c_in, c_hid, c_out):
    k1, k2, k3 = jax.random.split(key, 3)
    return {
        "w1": _glorot(k1, (c_in, c_hid)),  "b1": jnp.zeros((1, c_hid), jnp.float32),
        "w2": _glorot(k2, (c_hid, c_hid)), "b2": jnp.zeros((1, c_hid), jnp.float32),
        "w3": _glorot(k3, (c_hid, c_out)), "b3": jnp.zeros((1, c_out), jnp.float32),
    }


def init_policy_net(key, input_dim, hidden_dim, output_dim):
    k1, k2, k3, k4 = jax.random.split(key, 4)
    return {
        "conv1": init_gatv2_params(k1, input_dim, hidden_dim),
        "conv2": init_gatv2_params(k2, hidden_dim, hidden_dim),
        "conv5": init_gatv2_params(k3, hidden_dim, hidden_dim),
        "mlp": init_mlp_params(k4, hidden_dim, hidden_dim, output_dim),
    }


def edge_index_to_adj(edge_index, num_nodes):
    # adj[t, s] = 1 iff there is an edge s -> t (no self loops added:
    # the reference module uses GATv2Conv(..., add_self_loops=False))
    src, dst = edge_index[0], edge_index[1]
    adj = jnp.zeros((num_nodes, num_nodes), jnp.float32)
    return adj.at[dst, src].set(1.0)


# ----------------------------------- main ------------------------------------ #

if __name__ == "__main__":
    N, INPUT_DIM, HIDDEN_DIM, OUTPUT_DIM = 16, 8, 32, 4

    key = jax.random.PRNGKey(0)
    k_param, k_x = jax.random.split(key)

    params = init_policy_net(k_param, INPUT_DIM, HIDDEN_DIM, OUTPUT_DIM)
    x = jax.random.normal(k_x, (N, INPUT_DIM), jnp.float32)

    # deterministic graph: bidirectional ring + skip-3 edges (every node has in-edges)
    idx = jnp.arange(N)
    src = jnp.concatenate([idx, (idx + 1) % N, idx])
    dst = jnp.concatenate([(idx + 1) % N, idx, (idx + 3) % N])
    edge_index = jnp.stack([src, dst]).astype(jnp.int32)    # [2, 48]
    adj = edge_index_to_adj(edge_index, N)

    # one-time packing + jitted forward (only the pallas_call is in the hot path)
    w_slab, v_slab = prepare_params(params)
    forward = make_policy_net_forward(INPUT_DIM, HIDDEN_DIM, OUTPUT_DIM)

    out_padded = forward(x, adj, w_slab, v_slab)             # [N, 128] lane-dense
    out_padded = jax.block_until_ready(out_padded)

    out = out_padded[:, :OUTPUT_DIM]   # narrow slice kept out of the jitted path
    assert out.shape == (N, OUTPUT_DIM)
    assert bool(jnp.all(jnp.isfinite(out)))
    print("KERNEL_OK")
</pallas_src>

<mosaic_0001>
module attributes {stable_mosaic.version = 11 : i64} {
  func.func @kernel(%arg0: memref<16x8xf32, #tpu.memory_space<vmem>>, %arg1: memref<16x16xf32, #tpu.memory_space<vmem>>, %arg2: memref<176x128xbf16, #tpu.memory_space<vmem>>, %arg3: memref<16x128xf32, #tpu.memory_space<vmem>>, %arg4: memref<16x128xf32, #tpu.memory_space<vmem>>) attributes {dimension_semantics = [], scalar_prefetch = 0 : i64, scratch_operands = 0 : i64, tpu.core_type = #tpu.core_type<tc>} {
    %c0 = arith.constant 0 : index
    %c0_0 = arith.constant 0 : index
    %0 = vector.load %arg1[%c0, %c0_0] : memref<16x16xf32, #tpu.memory_space<vmem>>, vector<16x16xf32>
    %c0_1 = arith.constant 0 : index
    %c0_2 = arith.constant 0 : index
    %1 = vector.load %arg0[%c0_1, %c0_2] : memref<16x8xf32, #tpu.memory_space<vmem>>, vector<16x8xf32>
    %c0_3 = arith.constant 0 : index
    %c0_4 = arith.constant 0 : index
    %2 = vector.load %arg2[%c0_3, %c0_4] : memref<176x128xbf16, #tpu.memory_space<vmem>>, vector<8x64xbf16>
    %c0_5 = arith.constant 0 : index
    %c0_6 = arith.constant 0 : index
    %3 = vector.load %arg3[%c0_5, %c0_6] : memref<16x128xf32, #tpu.memory_space<vmem>>, vector<1x64xf32>
    %c1 = arith.constant 1 : index
    %c0_7 = arith.constant 0 : index
    %4 = vector.load %arg3[%c1, %c0_7] : memref<16x128xf32, #tpu.memory_space<vmem>>, vector<1x32xf32>
    %c2 = arith.constant 2 : index
    %c0_8 = arith.constant 0 : index
    %5 = vector.load %arg3[%c2, %c0_8] : memref<16x128xf32, #tpu.memory_space<vmem>>, vector<1x32xf32>
    %6 = arith.truncf %1 : vector<16x8xf32> to vector<16x8xbf16>
    %cst = arith.constant dense<0.000000e+00> : vector<16x64xf32>
    %7 = tpu.matmul %6, %2, %cst {dimension_numbers = #tpu.dot_dimension_numbers<[1], [0], [0], [1], [0, 0, 1, 1], [], []>} : vector<16x8xbf16>, vector<8x64xbf16>, vector<16x64xf32> -> vector<16x64xf32>
    %8 = vector.broadcast %3 : vector<1x64xf32> to vector<16x64xf32>
    %9 = arith.addf %7, %8 : vector<16x64xf32>
    %10 = vector.extract_strided_slice %9 {offsets = [0, 0], sizes = [16, 32], strides = [1, 1]} : vector<16x64xf32> to vector<16x32xf32>
    %11 = vector.extract_strided_slice %9 {offsets = [0, 32], sizes = [16, 32], strides = [1, 1]} : vector<16x64xf32> to vector<16x32xf32>
    %12 = vector.shape_cast %10 : vector<16x32xf32> to vector<1x16x32xf32>
    %13 = vector.shape_cast %11 : vector<16x32xf32> to vector<16x1x32xf32>
    %14 = vector.broadcast %12 : vector<1x16x32xf32> to vector<16x16x32xf32>
    %15 = vector.broadcast %13 : vector<16x1x32xf32> to vector<16x16x32xf32>
    %16 = arith.addf %14, %15 : vector<16x16x32xf32>
    %cst_9 = arith.constant 2.000000e-01 : f32
    %17 = vector.broadcast %cst_9 : f32 to vector<16x16x32xf32>
    %18 = arith.mulf %17, %16 : vector<16x16x32xf32>
    %19 = arith.maximumf %16, %18 : vector<16x16x32xf32>
    %20 = vector.shape_cast %4 : vector<1x32xf32> to vector<1x1x32xf32>
    %21 = vector.broadcast %20 : vector<1x1x32xf32> to vector<16x16x32xf32>
    %22 = arith.mulf %19, %21 : vector<16x16x32xf32>
    %cst_10 = arith.constant dense<0.000000e+00> : vector<16x16xf32>
    %23 = vector.multi_reduction <add>, %22, %cst_10 [2] : vector<16x16x32xf32> to vector<16x16xf32>
    %cst_11 = arith.constant 0.000000e+00 : f32
    %24 = vector.broadcast %cst_11 : f32 to vector<16x16xf32>
    %25 = arith.cmpf ogt, %0, %24 : vector<16x16xf32>
    %cst_12 = arith.constant -1.000000e+09 : f32
    %26 = vector.broadcast %cst_12 : f32 to vector<16x16xf32>
    %27 = arith.select %25, %23, %26 : vector<16x16xi1>, vector<16x16xf32>
    %cst_13 = arith.constant dense<0xFF800000> : vector<16xf32>
    %28 = vector.multi_reduction <maximumf>, %27, %cst_13 [1] : vector<16x16xf32> to vector<16xf32>
    %29 = vector.shape_cast %28 : vector<16xf32> to vector<16x1xf32>
    %30 = vector.broadcast %29 : vector<16x1xf32> to vector<16x16xf32>
    %31 = arith.subf %27, %30 : vector<16x16xf32>
    %32 = math.exp %31 : vector<16x16xf32>
    %33 = arith.mulf %32, %0 : vector<16x16xf32>
    %cst_14 = arith.constant dense<0.000000e+00> : vector<16xf32>
    %34 = vector.multi_reduction <add>, %33, %cst_14 [1] : vector<16x16xf32> to vector<16xf32>
    %35 = vector.shape_cast %34 : vector<16xf32> to vector<16x1xf32>
    %cst_15 = arith.constant 0.000000e+00 : f32
    %36 = vector.broadcast %cst_15 : f32 to vector<16x1xf32>
    %37 = arith.cmpf ogt, %35, %36 : vector<16x1xf32>
    %cst_16 = arith.constant 1.000000e+00 : f32
    %38 = vector.broadcast %cst_16 : f32 to vector<16x1xf32>
    %39 = arith.select %37, %35, %38 : vector<16x1xi1>, vector<16x1xf32>
    %40 = tpu.reciprocal %39 {approx = true} : vector<16x1xf32> -> vector<16x1xf32>
    %41 = vector.broadcast %40 : vector<16x1xf32> to vector<16x16xf32>
    %42 = arith.mulf %33, %41 : vector<16x16xf32>
    %43 = arith.truncf %42 : vector<16x16xf32> to vector<16x16xbf16>
    %44 = arith.truncf %10 : vector<16x32xf32> to vector<16x32xbf16>
    %cst_17 = arith.constant dense<0.000000e+00> : vector<16x32xf32>
    %45 = tpu.matmul %43, %44, %cst_17 {dimension_numbers = #tpu.dot_dimension_numbers<[1], [0], [0], [1], [0, 0, 1, 1], [], []>} : vector<16x16xbf16>, vector<16x32xbf16>, vector<16x32xf32> -> vector<16x32xf32>
    %46 = vector.broadcast %5 : vector<1x32xf32> to vector<16x32xf32>
    %47 = arith.addf %45, %46 : vector<16x32xf32>
    %cst_18 = arith.constant 0.000000e+00 : f32
    %48 = vector.broadcast %cst_18 : f32 to vector<16x32xf32>
    %49 = arith.maximumf %47, %48 : vector<16x32xf32>
    %c16 = arith.constant 16 : index
    %c0_19 = arith.constant 0 : index
    %50 = vector.load %arg2[%c16, %c0_19] : memref<176x128xbf16, #tpu.memory_space<vmem>>, vector<32x64xbf16>
    %c3 = arith.constant 3 : index
    %c0_20 = arith.constant 0 : index
    %51 = vector.load %arg3[%c3, %c0_20] : memref<16x128xf32, #tpu.memory_space<vmem>>, vector<1x64xf32>
    %c4 = arith.constant 4 : index
    %c0_21 = arith.constant 0 : index
    %52 = vector.load %arg3[%c4, %c0_21] : memref<16x128xf32, #tpu.memory_space<vmem>>, vector<1x32xf32>
    %c5 = arith.constant 5 : index
    %c0_22 = arith.constant 0 : index
    %53 = vector.load %arg3[%c5, %c0_22] : memref<16x128xf32, #tpu.memory_space<vmem>>, vector<1x32xf32>
    %54 = arith.truncf %49 : vector<16x32xf32> to vector<16x32xbf16>
    %cst_23 = arith.constant dense<0.000000e+00> : vector<16x64xf32>
    %55 = tpu.matmul %54, %50, %cst_23 {dimension_numbers = #tpu.dot_dimension_numbers<[1], [0], [0], [1], [0, 0, 1, 1], [], []>} : vector<16x32xbf16>, vector<32x64xbf16>, vector<16x64xf32> -> vector<16x64xf32>
    %56 = vector.broadcast %51 : vector<1x64xf32> to vector<16x64xf32>
    %57 = arith.addf %55, %56 : vector<16x64xf32>
    %58 = vector.extract_strided_slice %57 {offsets = [0, 0], sizes = [16, 32], strides = [1, 1]} : vector<16x64xf32> to vector<16x32xf32>
    %59 = vector.extract_strided_slice %57 {offsets = [0, 32], sizes = [16, 32], strides = [1, 1]} : vector<16x64xf32> to vector<16x32xf32>
    %60 = vector.shape_cast %58 : vector<16x32xf32> to vector<1x16x32xf32>
    %61 = vector.shape_cast %59 : vector<16x32xf32> to vector<16x1x32xf32>
    %62 = vector.broadcast %60 : vector<1x16x32xf32> to vector<16x16x32xf32>
    %63 = vector.broadcast %61 : vector<16x1x32xf32> to vector<16x16x32xf32>
    %64 = arith.addf %62, %63 : vector<16x16x32xf32>
    %cst_24 = arith.constant 2.000000e-01 : f32
    %65 = vector.broadcast %cst_24 : f32 to vector<16x16x32xf32>
    %66 = arith.mulf %65, %64 : vector<16x16x32xf32>
    %67 = arith.maximumf %64, %66 : vector<16x16x32xf32>
    %68 = vector.shape_cast %52 : vector<1x32xf32> to vector<1x1x32xf32>
    %69 = vector.broadcast %68 : vector<1x1x32xf32> to vector<16x16x32xf32>
    %70 = arith.mulf %67, %69 : vector<16x16x32xf32>
    %cst_25 = arith.constant dense<0.000000e+00> : vector<16x16xf32>
    %71 = vector.multi_reduction <add>, %70, %cst_25 [2] : vector<16x16x32xf32> to vector<16x16xf32>
    %cst_26 = arith.constant 0.000000e+00 : f32
    %72 = vector.broadcast %cst_26 : f32 to vector<16x16xf32>
    %73 = arith.cmpf ogt, %0, %72 : vector<16x16xf32>
    %cst_27 = arith.constant -1.000000e+09 : f32
    %74 = vector.broadcast %cst_27 : f32 to vector<16x16xf32>
    %75 = arith.select %73, %71, %74 : vector<16x16xi1>, vector<16x16xf32>
    %cst_28 = arith.constant dense<0xFF800000> : vector<16xf32>
    %76 = vector.multi_reduction <maximumf>, %75, %cst_28 [1] : vector<16x16xf32> to vector<16xf32>
    %77 = vector.shape_cast %76 : vector<16xf32> to vector<16x1xf32>
    %78 = vector.broadcast %77 : vector<16x1xf32> to vector<16x16xf32>
    %79 = arith.subf %75, %78 : vector<16x16xf32>
    %80 = math.exp %79 : vector<16x16xf32>
    %81 = arith.mulf %80, %0 : vector<16x16xf32>
    %cst_29 = arith.constant dense<0.000000e+00> : vector<16xf32>
    %82 = vector.multi_reduction <add>, %81, %cst_29 [1] : vector<16x16xf32> to vector<16xf32>
    %83 = vector.shape_cast %82 : vector<16xf32> to vector<16x1xf32>
    %cst_30 = arith.constant 0.000000e+00 : f32
    %84 = vector.broadcast %cst_30 : f32 to vector<16x1xf32>
    %85 = arith.cmpf ogt, %83, %84 : vector<16x1xf32>
    %cst_31 = arith.constant 1.000000e+00 : f32
    %86 = vector.broadcast %cst_31 : f32 to vector<16x1xf32>
    %87 = arith.select %85, %83, %86 : vector<16x1xi1>, vector<16x1xf32>
    %88 = tpu.reciprocal %87 {approx = true} : vector<16x1xf32> -> vector<16x1xf32>
    %89 = vector.broadcast %88 : vector<16x1xf32> to vector<16x16xf32>
    %90 = arith.mulf %81, %89 : vector<16x16xf32>
    %91 = arith.truncf %90 : vector<16x16xf32> to vector<16x16xbf16>
    %92 = arith.truncf %58 : vector<16x32xf32> to vector<16x32xbf16>
    %cst_32 = arith.constant dense<0.000000e+00> : vector<16x32xf32>
    %93 = tpu.matmul %91, %92, %cst_32 {dimension_numbers = #tpu.dot_dimension_numbers<[1], [0], [0], [1], [0, 0, 1, 1], [], []>} : vector<16x16xbf16>, vector<16x32xbf16>, vector<16x32xf32> -> vector<16x32xf32>
    %94 = vector.broadcast %53 : vector<1x32xf32> to vector<16x32xf32>
    %95 = arith.addf %93, %94 : vector<16x32xf32>
    %cst_33 = arith.constant 0.000000e+00 : f32
    %96 = vector.broadcast %cst_33 : f32 to vector<16x32xf32>
    %97 = arith.maximumf %95, %96 : vector<16x32xf32>
    %c48 = arith.constant 48 : index
    %c0_34 = arith.constant 0 : index
    %98 = vector.load %arg2[%c48, %c0_34] : memref<176x128xbf16, #tpu.memory_space<vmem>>, vector<32x64xbf16>
    %c6 = arith.constant 6 : index
    %c0_35 = arith.constant 0 : index
    %99 = vector.load %arg3[%c6, %c0_35] : memref<16x128xf32, #tpu.memory_space<vmem>>, vector<1x64xf32>
    %c7 = arith.constant 7 : index
    %c0_36 = arith.constant 0 : index
    %100 = vector.load %arg3[%c7, %c0_36] : memref<16x128xf32, #tpu.memory_space<vmem>>, vector<1x32xf32>
    %c8 = arith.constant 8 : index
    %c0_37 = arith.constant 0 : index
    %101 = vector.load %arg3[%c8, %c0_37] : memref<16x128xf32, #tpu.memory_space<vmem>>, vector<1x32xf32>
    %102 = arith.truncf %97 : vector<16x32xf32> to vector<16x32xbf16>
    %cst_38 = arith.constant dense<0.000000e+00> : vector<16x64xf32>
    %103 = tpu.matmul %102, %98, %cst_38 {dimension_numbers = #tpu.dot_dimension_numbers<[1], [0], [0], [1], [0, 0, 1, 1], [], []>} : vector<16x32xbf16>, vector<32x64xbf16>, vector<16x64xf32> -> vector<16x64xf32>
    %104 = vector.broadcast %99 : vector<1x64xf32> to vector<16x64xf32>
    %105 = arith.addf %103, %104 : vector<16x64xf32>
    %106 = vector.extract_strided_slice %105 {offsets = [0, 0], sizes = [16, 32], strides = [1, 1]} : vector<16x64xf32> to vector<16x32xf32>
    %107 = vector.extract_strided_slice %105 {offsets = [0, 32], sizes = [16, 32], strides = [1, 1]} : vector<16x64xf32> to vector<16x32xf32>
    %108 = vector.shape_cast %106 : vector<16x32xf32> to vector<1x16x32xf32>
    %109 = vector.shape_cast %107 : vector<16x32xf32> to vector<16x1x32xf32>
    %110 = vector.broadcast %108 : vector<1x16x32xf32> to vector<16x16x32xf32>
    %111 = vector.broadcast %109 : vector<16x1x32xf32> to vector<16x16x32xf32>
    %112 = arith.addf %110, %111 : vector<16x16x32xf32>
    %cst_39 = arith.constant 2.000000e-01 : f32
    %113 = vector.broadcast %cst_39 : f32 to vector<16x16x32xf32>
    %114 = arith.mulf %113, %112 : vector<16x16x32xf32>
    %115 = arith.maximumf %112, %114 : vector<16x16x32xf32>
    %116 = vector.shape_cast %100 : vector<1x32xf32> to vector<1x1x32xf32>
    %117 = vector.broadcast %116 : vector<1x1x32xf32> to vector<16x16x32xf32>
    %118 = arith.mulf %115, %117 : vector<16x16x32xf32>
    %cst_40 = arith.constant dense<0.000000e+00> : vector<16x16xf32>
    %119 = vector.multi_reduction <add>, %118, %cst_40 [2] : vector<16x16x32xf32> to vector<16x16xf32>
    %cst_41 = arith.constant 0.000000e+00 : f32
    %120 = vector.broadcast %cst_41 : f32 to vector<16x16xf32>
    %121 = arith.cmpf ogt, %0, %120 : vector<16x16xf32>
    %cst_42 = arith.constant -1.000000e+09 : f32
    %122 = vector.broadcast %cst_42 : f32 to vector<16x16xf32>
    %123 = arith.select %121, %119, %122 : vector<16x16xi1>, vector<16x16xf32>
    %cst_43 = arith.constant dense<0xFF800000> : vector<16xf32>
    %124 = vector.multi_reduction <maximumf>, %123, %cst_43 [1] : vector<16x16xf32> to vector<16xf32>
    %125 = vector.shape_cast %124 : vector<16xf32> to vector<16x1xf32>
    %126 = vector.broadcast %125 : vector<16x1xf32> to vector<16x16xf32>
    %127 = arith.subf %123, %126 : vector<16x16xf32>
    %128 = math.exp %127 : vector<16x16xf32>
    %129 = arith.mulf %128, %0 : vector<16x16xf32>
    %cst_44 = arith.constant dense<0.000000e+00> : vector<16xf32>
    %130 = vector.multi_reduction <add>, %129, %cst_44 [1] : vector<16x16xf32> to vector<16xf32>
    %131 = vector.shape_cast %130 : vector<16xf32> to vector<16x1xf32>
    %cst_45 = arith.constant 0.000000e+00 : f32
    %132 = vector.broadcast %cst_45 : f32 to vector<16x1xf32>
    %133 = arith.cmpf ogt, %131, %132 : vector<16x1xf32>
    %cst_46 = arith.constant 1.000000e+00 : f32
    %134 = vector.broadcast %cst_46 : f32 to vector<16x1xf32>
    %135 = arith.select %133, %131, %134 : vector<16x1xi1>, vector<16x1xf32>
    %136 = tpu.reciprocal %135 {approx = true} : vector<16x1xf32> -> vector<16x1xf32>
    %137 = vector.broadcast %136 : vector<16x1xf32> to vector<16x16xf32>
    %138 = arith.mulf %129, %137 : vector<16x16xf32>
    %139 = arith.truncf %138 : vector<16x16xf32> to vector<16x16xbf16>
    %140 = arith.truncf %106 : vector<16x32xf32> to vector<16x32xbf16>
    %cst_47 = arith.constant dense<0.000000e+00> : vector<16x32xf32>
    %141 = tpu.matmul %139, %140, %cst_47 {dimension_numbers = #tpu.dot_dimension_numbers<[1], [0], [0], [1], [0, 0, 1, 1], [], []>} : vector<16x16xbf16>, vector<16x32xbf16>, vector<16x32xf32> -> vector<16x32xf32>
    %142 = vector.broadcast %101 : vector<1x32xf32> to vector<16x32xf32>
    %143 = arith.addf %141, %142 : vector<16x32xf32>
    %c80 = arith.constant 80 : index
    %c0_48 = arith.constant 0 : index
    %144 = vector.load %arg2[%c80, %c0_48] : memref<176x128xbf16, #tpu.memory_space<vmem>>, vector<32x32xbf16>
    %c9 = arith.constant 9 : index
    %c0_49 = arith.constant 0 : index
    %145 = vector.load %arg3[%c9, %c0_49] : memref<16x128xf32, #tpu.memory_space<vmem>>, vector<1x32xf32>
    %146 = arith.truncf %143 : vector<16x32xf32> to vector<16x32xbf16>
    %cst_50 = arith.constant dense<0.000000e+00> : vector<16x32xf32>
    %147 = tpu.matmul %146, %144, %cst_50 {dimension_numbers = #tpu.dot_dimension_numbers<[1], [0], [0], [1], [0, 0, 1, 1], [], []>} : vector<16x32xbf16>, vector<32x32xbf16>, vector<16x32xf32> -> vector<16x32xf32>
    %148 = vector.broadcast %145 : vector<1x32xf32> to vector<16x32xf32>
    %149 = arith.addf %147, %148 : vector<16x32xf32>
    %cst_51 = arith.constant 0.000000e+00 : f32
    %150 = vector.broadcast %cst_51 : f32 to vector<16x32xf32>
    %151 = arith.maximumf %149, %150 : vector<16x32xf32>
    %c112 = arith.constant 112 : index
    %c0_52 = arith.constant 0 : index
    %152 = vector.load %arg2[%c112, %c0_52] : memref<176x128xbf16, #tpu.memory_space<vmem>>, vector<32x32xbf16>
    %c10 = arith.constant 10 : index
    %c0_53 = arith.constant 0 : index
    %153 = vector.load %arg3[%c10, %c0_53] : memref<16x128xf32, #tpu.memory_space<vmem>>, vector<1x32xf32>
    %154 = arith.truncf %151 : vector<16x32xf32> to vector<16x32xbf16>
    %cst_54 = arith.constant dense<0.000000e+00> : vector<16x32xf32>
    %155 = tpu.matmul %154, %152, %cst_54 {dimension_numbers = #tpu.dot_dimension_numbers<[1], [0], [0], [1], [0, 0, 1, 1], [], []>} : vector<16x32xbf16>, vector<32x32xbf16>, vector<16x32xf32> -> vector<16x32xf32>
    %156 = vector.broadcast %153 : vector<1x32xf32> to vector<16x32xf32>
    %157 = arith.addf %155, %156 : vector<16x32xf32>
    %cst_55 = arith.constant 0.000000e+00 : f32
    %158 = vector.broadcast %cst_55 : f32 to vector<16x32xf32>
    %159 = arith.maximumf %157, %158 : vector<16x32xf32>
    %c144 = arith.constant 144 : index
    %c0_56 = arith.constant 0 : index
    %160 = vector.load %arg2[%c144, %c0_56] : memref<176x128xbf16, #tpu.memory_space<vmem>>, vector<32x128xbf16>
    %c11 = arith.constant 11 : index
    %c0_57 = arith.constant 0 : index
    %161 = vector.load %arg3[%c11, %c0_57] : memref<16x128xf32, #tpu.memory_space<vmem>>, vector<1x128xf32>
    %162 = arith.truncf %159 : vector<16x32xf32> to vector<16x32xbf16>
    %cst_58 = arith.constant dense<0.000000e+00> : vector<16x128xf32>
    %163 = tpu.matmul %162, %160, %cst_58 {dimension_numbers = #tpu.dot_dimension_numbers<[1], [0], [0], [1], [0, 0, 1, 1], [], []>} : vector<16x32xbf16>, vector<32x128xbf16>, vector<16x128xf32> -> vector<16x128xf32>
    %164 = vector.broadcast %161 : vector<1x128xf32> to vector<16x128xf32>
    %165 = arith.addf %163, %164 : vector<16x128xf32>
    %c0_59 = arith.constant 0 : index
    %c0_60 = arith.constant 0 : index
    %166 = vector.load %arg4[%c0_59, %c0_60] : memref<16x128xf32, #tpu.memory_space<vmem>>, vector<16x128xf32>
    tpu.vector_store %arg4[%c0_59, %c0_60], %165 {strides = array<i32>} : memref<16x128xf32, #tpu.memory_space<vmem>>, vector<16x128xf32>,
    return
  }
}

</mosaic_0001>

<llo_original>
// kernel: forward.1
$region0: #{forward.1}
  #allocation0 [shape = 'u32[]', space=smem, size = 0x4, offset = 0x4, fixed_abs, tag = 'smem constant byte address 0x4 - core index']
  #allocation1 [shape = 'u32[144,128]{1,0:T(1,128)}', space=vmem, size = 0x12000, scoped, tag = 'internal scratch']
  %s0 = inlined_call_operand.vmem [shape: f32[16,8], index: 0, kind: input, shape index: {}]
  %s1 = inlined_call_operand.vmem [shape: f32[16,16], index: 1, kind: input, shape index: {}]
  %s2 = inlined_call_operand.hbm [shape: bf16[176,128], index: 2, kind: input, shape index: {}]
  %s3 = inlined_call_operand.hbm [shape: f32[16,128], index: 3, kind: input, shape index: {}]
  %s4 = inlined_call_operand.hbm [shape: f32[16,128], index: 4, kind: output, shape index: {}]
  %s5 = sld [smem:[#allocation0]]
  $region34: #{forward.1} parent=0
    _
  %s7 = ssub.s32 1, %s5
  %s8 = scalar_select 0, %s7, %s5
  $region1: #{forward.1} parent=0
    #allocation2 [shape = 'u8[45056]{0}', space=vmem, size = 0xb000, scoped, tag = 'input window, operand 2, single buffered']
    #allocation3 [shape = 's32[1]{0}', space=sflag, size = 0x4, scoped, tag = 'scoped memory for forward.1']
    #allocation4 [shape = 's32[1]{0}', space=sflag, size = 0x4, scoped, tag = 'scoped memory for forward.1']
    #allocation5 [shape = 'u8[8192]{0}', space=vmem, size = 0x2000, scoped, tag = 'input window, operand 3, single buffered']
    #allocation6 [shape = 's32[1]{0}', space=sflag, size = 0x4, scoped, tag = 'scoped memory for forward.1']
    #allocation7 [shape = 'u8[8192]{0}', space=vmem, size = 0x2000, scoped, tag = 'output window, operand 0, single buffered']
    %9 = vsyncpa [#allocation3], 0
    %10 = vsyncpa [#allocation6], 0
    %11 = vsyncpa [#allocation4], 0
    // Predicated region
    $region2: #{forward.1} parent=1 // pred_check
      _
    $region3: #{forward.1} parent=1 // pred_check_branch
      %13 = sbr.rel (0) target = $region5
    $region4: #{forward.1} parent=1 // pred_region
      _
    $region5: #{forward.1} parent=1 // pred_fallthru
      _
    // Predicated region
    $region6: #{forward.1} parent=1 // pred_check
      _
    $region7: #{forward.1} parent=1 // pred_check_branch
      %15 = sbr.rel (0) target = $region9
    $region8: #{forward.1} parent=1 // pred_region
      _
    $region9: #{forward.1} parent=1 // pred_fallthru
      _
    // Predicated region
    $region10: #{forward.1} parent=1 // pred_check
      _
    $region11: #{forward.1} parent=1 // pred_check_branch
      %17 = sbr.rel (0) target = $region13
    $region12: #{forward.1} parent=1 // pred_region
      %s19 = ssub.s32 1408, 1408
      %20 = vsyncadd [#allocation3], %s19
      %s21 = sshll.u32 [#allocation2], 4
      %s22 = int_to_ptr.vmem [resolvable:$true] %s21
      %27 = dma.hbm_to_vmem [thread:$0]  %s2, 1408, %s22, [#allocation3], 64, 64, 4
    $region13: #{forward.1} parent=1 // pred_fallthru
      _
    // Predicated region
    $region14: #{forward.1} parent=1 // pred_check
      _
    $region15: #{forward.1} parent=1 // pred_check_branch
      %29 = sbr.rel (0) target = $region17
    $region16: #{forward.1} parent=1 // pred_region
      %s31 = ssub.s32 256, 256
      %32 = vsyncadd [#allocation6], %s31
      %s33 = sshll.u32 [#allocation5], 4
      %s34 = int_to_ptr.vmem [resolvable:$true] %s33
      %39 = dma.hbm_to_vmem [thread:$0]  %s3, 256, %s34, [#allocation6], 128, 128, 8
    $region17: #{forward.1} parent=1 // pred_fallthru
      _
    // Predicated region
    $region18: #{forward.1} parent=1 // pred_check
      _
    $region19: #{forward.1} parent=1 // pred_check_branch
      %41 = sbr.rel (0) target = $region21
    $region20: #{forward.1} parent=1 // pred_region
      %42 = dma.done [#allocation3], 1408
    $region21: #{forward.1} parent=1 // pred_fallthru
      _
    // Predicated region
    $region22: #{forward.1} parent=1 // pred_check
      _
    $region23: #{forward.1} parent=1 // pred_check_branch
      %44 = sbr.rel (0) target = $region25
    $region24: #{forward.1} parent=1 // pred_region
      %45 = dma.done [#allocation6], 256
    $region25: #{forward.1} parent=1 // pred_fallthru
      _
    %v47 = vld [vmem:[%s1] sm:$0xff]
    %v48 = vld [vmem:[%s1 + $0x8] sm:$0xff]
    %v49 = vld [vmem:[%s0] sm:$0xff]
    %v50 = vld [vmem:[%s0 + $0x8] sm:$0xff]
    %v51 = vld [vmem:[#allocation2] sm:$0xf]
    %v52 = vld [vmem:[#allocation5] sm:$0x1]
    %v53 = vld [vmem:[#allocation5 + $0x1] sm:$0x1]
    %v54 = vld [vmem:[#allocation5 + $0x2] sm:$0x1]
    %v55 = vpack.c.bf16 %v50, %v49
    %v56 = vlaneseq
    %v57 = vshrl.u32 %v56, 7
    %v58 = vsub.s32 0, %v57
    %v59 = vrot.slane %v52, %v58
    %vm60 = vcmask 64512
    %v62 = vsel %vm60, %v55, 0
    %vm64 = vcmask 1043456
    %v66 = vsel %vm64, %v51, 0
    %68 = vmatprep.subr.bf16.mxu0 0
    %69 = vmatpush1.bf16.msra.mxu0 0
    %70 = vmatprep.subr.bf16.mxu0 0
    %71 = vmatpush1.bf16.msra.mxu0 0
    %72 = vmatprep.subr.bf16.mxu0 0
    %73 = vmatpush1.bf16.msra.mxu0 0
    %74 = vmatprep.subr.bf16.mxu0 0
    %75 = vmatpush1.bf16.msra.mxu0 0
    %76 = vmatprep.subr.bf16.mxu0 0
    %77 = vmatpush1.bf16.msra.mxu0 0
    %78 = vmatprep.subr.bf16.mxu0 0
    %79 = vmatpush1.bf16.msra.mxu0 0
    %80 = vmatprep.subr.bf16.mxu0 0
    %81 = vmatpush1.bf16.msra.mxu0 0
    %82 = vmatprep.subr.bf16.mxu0 0
    %83 = vmatpush1.bf16.msra.mxu0 %v66
    %84 = vmatprep.subr.bf16.mxu0 0
    %85 = vmatpush2.bf16.msra.mxu0 0
    %86 = vmatprep.subr.bf16.mxu0 0
    %87 = vmatpush2.bf16.msra.mxu0 0
    %88 = vmatprep.subr.bf16.mxu0 0
    %89 = vmatpush2.bf16.msra.mxu0 0
    %90 = vmatprep.subr.bf16.mxu0 0
    %91 = vmatpush2.bf16.msra.mxu0 0
    %92 = vmatprep.subr.bf16.mxu0 0
    %93 = vmatpush2.bf16.msra.mxu0 0
    %94 = vmatprep.subr.bf16.mxu0 0
    %95 = vmatpush2.bf16.msra.mxu0 0
    %96 = vmatprep.subr.bf16.mxu0 0
    %97 = vmatpush2.bf16.msra.mxu0 0
    %98 = vmatprep.subr.bf16.mxu0 0
    %99 = vmatpush2.bf16.msra.mxu0 0
    %100 = vmatprep.mubr.bf16.mxu0 0
    %101 = vmatmul.mubr.bf16.gmra.mxu0 %v62
    %v102 = vpop.f32.mrf.mxu0
    %v103 = vadd.f32 %v59, %v102
    %v104 = vpop.f32.mrf.mxu0
    %v105 = vpop.f32.mrf.mxu0
    %v106 = vadd.f32 %v59, %v105
    %v107 = vpop.f32.mrf.mxu0
    %108 = vdwg.mxu0
    %v111 = vcombine.high %v103, %v103
    %v113 = vunpack.c.l.s4 1966171168
    %v114 = vunpack.c.0.s8 %v113
    %v115 = vlaneseq
    %v116 = vshrl.u32 %v115, 7
    %v117 = vsub.s32 %v114, %v116
    %v118 = vrot.slane %v103, %v117
    %v120 = vunpack.c.l.s4 1966171168
    %v121 = vunpack.c.0.s8 %v120
    %v122 = vlaneseq
    %v123 = vshrl.u32 %v122, 7
    %v124 = vsub.s32 %v121, %v123
    %v125 = vrot.slane %v111, %v124
    %v126 = vcombine.high %v118, %v118
    %v127 = vcombine.high %v125, %v125
    %v129 = vunpack.c.l.s4 1966171168
    %v130 = vunpack.c.0.s8 %v129
    %v131 = vlaneseq
    %v132 = vshrl.u32 %v131, 7
    %v133 = vsub.s32 %v130, %v132
    %v134 = vrot.slane %v118, %v133
    %v136 = vunpack.c.l.s4 1966171168
    %v137 = vunpack.c.0.s8 %v136
    %v138 = vlaneseq
    %v139 = vshrl.u32 %v138, 7
    %v140 = vsub.s32 %v137, %v139
    %v141 = vrot.slane %v125, %v140
    %v143 = vunpack.c.l.s4 1966171168
    %v144 = vunpack.c.0.s8 %v143
    %v145 = vlaneseq
    %v146 = vshrl.u32 %v145, 7
    %v147 = vsub.s32 %v144, %v146
    %v148 = vrot.slane %v126, %v147
    %v150 = vunpack.c.l.s4 1966171168
    %v151 = vunpack.c.0.s8 %v150
    %v152 = vlaneseq
    %v153 = vshrl.u32 %v152, 7
    %v154 = vsub.s32 %v151, %v153
    %v155 = vrot.slane %v127, %v154
    %v156 = vcombine.high %v134, %v134
    %v157 = vcombine.high %v141, %v141
    %v158 = vcombine.high %v148, %v148
    %v159 = vcombine.high %v155, %v155
    %v160 = vcombine.high %v106, %v106
    %v162 = vunpack.c.l.s4 1966171168
    %v163 = vunpack.c.0.s8 %v162
    %v164 = vlaneseq
    %v165 = vshrl.u32 %v164, 7
    %v166 = vsub.s32 %v163, %v165
    %v167 = vrot.slane %v106, %v166
    %v169 = vunpack.c.l.s4 1966171168
    %v170 = vunpack.c.0.s8 %v169
    %v171 = vlaneseq
    %v172 = vshrl.u32 %v171, 7
    %v173 = vsub.s32 %v170, %v172
    %v174 = vrot.slane %v160, %v173
    %v175 = vcombine.high %v167, %v167
    %v176 = vcombine.high %v174, %v174
    %v178 = vunpack.c.l.s4 1966171168
    %v179 = vunpack.c.0.s8 %v178
    %v180 = vlaneseq
    %v181 = vshrl.u32 %v180, 7
    %v182 = vsub.s32 %v179, %v181
    %v183 = vrot.slane %v167, %v182
    %v185 = vunpack.c.l.s4 1966171168
    %v186 = vunpack.c.0.s8 %v185
    %v187 = vlaneseq
    %v188 = vshrl.u32 %v187, 7
    %v189 = vsub.s32 %v186, %v188
    %v190 = vrot.slane %v174, %v189
    %v192 = vunpack.c.l.s4 1966171168
    %v193 = vunpack.c.0.s8 %v192
    %v194 = vlaneseq
    %v195 = vshrl.u32 %v194, 7
    %v196 = vsub.s32 %v193, %v195
    %v197 = vrot.slane %v175, %v196
    %v199 = vunpack.c.l.s4 1966171168
    %v200 = vunpack.c.0.s8 %v199
    %v201 = vlaneseq
    %v202 = vshrl.u32 %v201, 7
    %v203 = vsub.s32 %v200, %v202
    %v204 = vrot.slane %v176, %v203
    %v205 = vcombine.high %v183, %v183
    %v206 = vcombine.high %v190, %v190
    %v207 = vcombine.high %v197, %v197
    %v208 = vcombine.high %v204, %v204
    %v209 = vlaneseq
    %v210 = vshrl.u32 %v209, 7
    %v211 = vsub.s32 0, %v210
    %v212 = vrot.slane %v134, %v211
    %v213 = vlaneseq
    %v214 = vshrl.u32 %v213, 7
    %v215 = vsub.s32 0, %v214
    %v216 = vrot.slane %v148, %v215
    %v217 = vlaneseq
    %v218 = vshrl.u32 %v217, 7
    %v219 = vsub.s32 0, %v218
    %v220 = vrot.slane %v156, %v219
    %v221 = vlaneseq
    %v222 = vshrl.u32 %v221, 7
    %v223 = vsub.s32 0, %v222
    %v224 = vrot.slane %v158, %v223
    %v225 = vlaneseq
    %v226 = vshrl.u32 %v225, 7
    %v227 = vsub.s32 0, %v226
    %v228 = vrot.slane %v141, %v227
    %v229 = vlaneseq
    %v230 = vshrl.u32 %v229, 7
    %v231 = vsub.s32 0, %v230
    %v232 = vrot.slane %v155, %v231
    %v233 = vlaneseq
    %v234 = vshrl.u32 %v233, 7
    %v235 = vsub.s32 0, %v234
    %v236 = vrot.slane %v157, %v235
    %v237 = vlaneseq
    %v238 = vshrl.u32 %v237, 7
    %v239 = vsub.s32 0, %v238
    %v240 = vrot.slane %v159, %v239
    %v241 = vlaneseq
    %v242 = vshrl.u32 %v241, 7
    %v243 = vsub.s32 0, %v242
    %v244 = vrot.slane %v183, %v243
    %v245 = vlaneseq
    %v246 = vshrl.u32 %v245, 7
    %v247 = vsub.s32 0, %v246
    %v248 = vrot.slane %v197, %v247
    %v249 = vlaneseq
    %v250 = vshrl.u32 %v249, 7
    %v251 = vsub.s32 0, %v250
    %v252 = vrot.slane %v205, %v251
    %v253 = vlaneseq
    %v254 = vshrl.u32 %v253, 7
    %v255 = vsub.s32 0, %v254
    %v256 = vrot.slane %v207, %v255
    %v257 = vlaneseq
    %v258 = vshrl.u32 %v257, 7
    %v259 = vsub.s32 0, %v258
    %v260 = vrot.slane %v190, %v259
    %v261 = vlaneseq
    %v262 = vshrl.u32 %v261, 7
    %v263 = vsub.s32 0, %v262
    %v264 = vrot.slane %v204, %v263
    %v265 = vlaneseq
    %v266 = vshrl.u32 %v265, 7
    %v267 = vsub.s32 0, %v266
    %v268 = vrot.slane %v206, %v267
    %v269 = vlaneseq
    %v270 = vshrl.u32 %v269, 7
    %v271 = vsub.s32 0, %v270
    %v272 = vrot.slane %v208, %v271
    %273 = vrot.lane.b32.xlu0 %v212, 96
    %v274 = vpop.permute.xlu0 %273
    %275 = vrot.lane.b32.xlu0 %v216, 96
    %v276 = vpop.permute.xlu0 %275
    %277 = vrot.lane.b32.xlu0 %v220, 96
    %v278 = vpop.permute.xlu0 %277
    %279 = vrot.lane.b32.xlu0 %v224, 96
    %v280 = vpop.permute.xlu0 %279
    %281 = vrot.lane.b32.xlu0 %v228, 96
    %v282 = vpop.permute.xlu0 %281
    %283 = vrot.lane.b32.xlu0 %v232, 96
    %v284 = vpop.permute.xlu0 %283
    %285 = vrot.lane.b32.xlu0 %v236, 96
    %v286 = vpop.permute.xlu0 %285
    %287 = vrot.lane.b32.xlu0 %v240, 96
    %v288 = vpop.permute.xlu0 %287
    %289 = vrot.lane.b32.xlu0 %v244, 96
    %v290 = vpop.permute.xlu0 %289
    %291 = vrot.lane.b32.xlu0 %v248, 96
    %v292 = vpop.permute.xlu0 %291
    %293 = vrot.lane.b32.xlu0 %v252, 96
    %v294 = vpop.permute.xlu0 %293
    %295 = vrot.lane.b32.xlu0 %v256, 96
    %v296 = vpop.permute.xlu0 %295
    %297 = vrot.lane.b32.xlu0 %v260, 96
    %v298 = vpop.permute.xlu0 %297
    %299 = vrot.lane.b32.xlu0 %v264, 96
    %v300 = vpop.permute.xlu0 %299
    %301 = vrot.lane.b32.xlu0 %v268, 96
    %v302 = vpop.permute.xlu0 %301
    %303 = vrot.lane.b32.xlu0 %v272, 96
    %v304 = vpop.permute.xlu0 %303
    %v321 = vadd.f32 %v103, %v274
    %v322 = vadd.f32 %v106, %v274
    %v323 = vadd.f32 %v103, %v276
    %v324 = vadd.f32 %v106, %v276
    %v325 = vadd.f32 %v103, %v278
    %v326 = vadd.f32 %v106, %v278
    %v327 = vadd.f32 %v103, %v280
    %v328 = vadd.f32 %v106, %v280
    %v329 = vadd.f32 %v103, %v282
    %v330 = vadd.f32 %v106, %v282
    %v331 = vadd.f32 %v103, %v284
    %v332 = vadd.f32 %v106, %v284
    %v333 = vadd.f32 %v103, %v286
    %v334 = vadd.f32 %v106, %v286
    %v335 = vadd.f32 %v103, %v288
    %v336 = vadd.f32 %v106, %v288
    %v337 = vadd.f32 %v103, %v290
    %v338 = vadd.f32 %v106, %v290
    %v339 = vadd.f32 %v103, %v292
    %v340 = vadd.f32 %v106, %v292
    %v341 = vadd.f32 %v103, %v294
    %v342 = vadd.f32 %v106, %v294
    %v343 = vadd.f32 %v103, %v296
    %v344 = vadd.f32 %v106, %v296
    %v345 = vadd.f32 %v103, %v298
    %v346 = vadd.f32 %v106, %v298
    %v347 = vadd.f32 %v103, %v300
    %v348 = vadd.f32 %v106, %v300
    %v349 = vadd.f32 %v103, %v302
    %v350 = vadd.f32 %v106, %v302
    %v351 = vadd.f32 %v103, %v304
    %v352 = vadd.f32 %v106, %v304
    %v353 = vmul.f32 %v321, 0.2
    %v354 = vmul.f32 %v322, 0.2
    %v355 = vmul.f32 %v323, 0.2
    %v356 = vmul.f32 %v324, 0.2
    %v357 = vmul.f32 %v325, 0.2
    %v358 = vmul.f32 %v326, 0.2
    %v359 = vmul.f32 %v327, 0.2
    %v360 = vmul.f32 %v328, 0.2
    %v361 = vmul.f32 %v329, 0.2
    %v362 = vmul.f32 %v330, 0.2
    %v363 = vmul.f32 %v331, 0.2
    %v364 = vmul.f32 %v332, 0.2
    %v365 = vmul.f32 %v333, 0.2
    %v366 = vmul.f32 %v334, 0.2
    %v367 = vmul.f32 %v335, 0.2
    %v368 = vmul.f32 %v336, 0.2
    %v369 = vmul.f32 %v337, 0.2
    %v370 = vmul.f32 %v338, 0.2
    %v371 = vmul.f32 %v339, 0.2
    %v372 = vmul.f32 %v340, 0.2
    %v373 = vmul.f32 %v341, 0.2
    %v374 = vmul.f32 %v342, 0.2
    %v375 = vmul.f32 %v343, 0.2
    %v376 = vmul.f32 %v344, 0.2
    %v377 = vmul.f32 %v345, 0.2
    %v378 = vmul.f32 %v346, 0.2
    %v379 = vmul.f32 %v347, 0.2
    %v380 = vmul.f32 %v348, 0.2
    %v381 = vmul.f32 %v349, 0.2
    %v382 = vmul.f32 %v350, 0.2
    %v383 = vmul.f32 %v351, 0.2
    %v384 = vmul.f32 %v352, 0.2
    %v385 = vmax.f32 %v321, %v353
    %v386 = vmax.f32 %v322, %v354
    %v387 = vmax.f32 %v323, %v355
    %v388 = vmax.f32 %v324, %v356
    %v389 = vmax.f32 %v325, %v357
    %v390 = vmax.f32 %v326, %v358
    %v391 = vmax.f32 %v327, %v359
    %v392 = vmax.f32 %v328, %v360
    %v393 = vmax.f32 %v329, %v361
    %v394 = vmax.f32 %v330, %v362
    %v395 = vmax.f32 %v331, %v363
    %v396 = vmax.f32 %v332, %v364
    %v397 = vmax.f32 %v333, %v365
    %v398 = vmax.f32 %v334, %v366
    %v399 = vmax.f32 %v335, %v367
    %v400 = vmax.f32 %v336, %v368
    %v401 = vmax.f32 %v337, %v369
    %v402 = vmax.f32 %v338, %v370
    %v403 = vmax.f32 %v339, %v371
    %v404 = vmax.f32 %v340, %v372
    %v405 = vmax.f32 %v341, %v373
    %v406 = vmax.f32 %v342, %v374
    %v407 = vmax.f32 %v343, %v375
    %v408 = vmax.f32 %v344, %v376
    %v409 = vmax.f32 %v345, %v377
    %v410 = vmax.f32 %v346, %v378
    %v411 = vmax.f32 %v347, %v379
    %v412 = vmax.f32 %v348, %v380
    %v413 = vmax.f32 %v349, %v381
    %v414 = vmax.f32 %v350, %v382
    %v415 = vmax.f32 %v351, %v383
    %v416 = vmax.f32 %v352, %v384
    %v417 = vlaneseq
    %v418 = vshrl.u32 %v417, 7
    %v419 = vsub.s32 0, %v418
    %v420 = vrot.slane %v53, %v419
    %v421 = vmul.f32 %v385, %v420
    %v422 = vmul.f32 %v386, %v420
    %v423 = vmul.f32 %v387, %v420
    %v424 = vmul.f32 %v388, %v420
    %v425 = vmul.f32 %v389, %v420
    %v426 = vmul.f32 %v390, %v420
    %v427 = vmul.f32 %v391, %v420
    %v428 = vmul.f32 %v392, %v420
    %v429 = vmul.f32 %v393, %v420
    %v430 = vmul.f32 %v394, %v420
    %v431 = vmul.f32 %v395, %v420
    %v432 = vmul.f32 %v396, %v420
    %v433 = vmul.f32 %v397, %v420
    %v434 = vmul.f32 %v398, %v420
    %v435 = vmul.f32 %v399, %v420
    %v436 = vmul.f32 %v400, %v420
    %v437 = vmul.f32 %v401, %v420
    %v438 = vmul.f32 %v402, %v420
    %v439 = vmul.f32 %v403, %v420
    %v440 = vmul.f32 %v404, %v420
    %v441 = vmul.f32 %v405, %v420
    %v442 = vmul.f32 %v406, %v420
    %v443 = vmul.f32 %v407, %v420
    %v444 = vmul.f32 %v408, %v420
    %v445 = vmul.f32 %v409, %v420
    %v446 = vmul.f32 %v410, %v420
    %v447 = vmul.f32 %v411, %v420
    %v448 = vmul.f32 %v412, %v420
    %v449 = vmul.f32 %v413, %v420
    %v450 = vmul.f32 %v414, %v420
    %v451 = vmul.f32 %v415, %v420
    %v452 = vmul.f32 %v416, %v420
    %vm453 = vcmask 261120
    %v454 = vsel %vm453, %v421, 0.0
    %455 = vadd.xlane.f32.xlu0 %v454
    %v456 = vpop.xlane.xlu0 %455
    %v457 = vsel %vm453, %v422, 0.0
    %458 = vadd.xlane.f32.xlu0 %v457
    %v459 = vpop.xlane.xlu0 %458
    %v460 = vsel %vm453, %v423, 0.0
    %461 = vadd.xlane.f32.xlu0 %v460
    %v462 = vpop.xlane.xlu0 %461
    %v463 = vsel %vm453, %v424, 0.0
    %464 = vadd.xlane.f32.xlu0 %v463
    %v465 = vpop.xlane.xlu0 %464
    %v466 = vsel %vm453, %v425, 0.0
    %467 = vadd.xlane.f32.xlu0 %v466
    %v468 = vpop.xlane.xlu0 %467
    %v469 = vsel %vm453, %v426, 0.0
    %470 = vadd.xlane.f32.xlu0 %v469
    %v471 = vpop.xlane.xlu0 %470
    %v472 = vsel %vm453, %v427, 0.0
    %473 = vadd.xlane.f32.xlu0 %v472
    %v474 = vpop.xlane.xlu0 %473
    %v475 = vsel %vm453, %v428, 0.0
    %476 = vadd.xlane.f32.xlu0 %v475
    %v477 = vpop.xlane.xlu0 %476
    %v478 = vsel %vm453, %v429, 0.0
    %479 = vadd.xlane.f32.xlu0 %v478
    %v480 = vpop.xlane.xlu0 %479
    %v481 = vsel %vm453, %v430, 0.0
    %482 = vadd.xlane.f32.xlu0 %v481
    %v483 = vpop.xlane.xlu0 %482
    %v484 = vsel %vm453, %v431, 0.0
    %485 = vadd.xlane.f32.xlu0 %v484
    %v486 = vpop.xlane.xlu0 %485
    %v487 = vsel %vm453, %v432, 0.0
    %488 = vadd.xlane.f32.xlu0 %v487
    %v489 = vpop.xlane.xlu0 %488
    %v490 = vsel %vm453, %v433, 0.0
    %491 = vadd.xlane.f32.xlu0 %v490
    %v492 = vpop.xlane.xlu0 %491
    %v493 = vsel %vm453, %v434, 0.0
    %494 = vadd.xlane.f32.xlu0 %v493
    %v495 = vpop.xlane.xlu0 %494
    %v496 = vsel %vm453, %v435, 0.0
    %497 = vadd.xlane.f32.xlu0 %v496
    %v498 = vpop.xlane.xlu0 %497
    %v499 = vsel %vm453, %v436, 0.0
    %500 = vadd.xlane.f32.xlu0 %v499
    %v501 = vpop.xlane.xlu0 %500
    %v502 = vsel %vm453, %v437, 0.0
    %503 = vadd.xlane.f32.xlu0 %v502
    %v504 = vpop.xlane.xlu0 %503
    %v505 = vsel %vm453, %v438, 0.0
    %506 = vadd.xlane.f32.xlu0 %v505
    %v507 = vpop.xlane.xlu0 %506
    %v508 = vsel %vm453, %v439, 0.0
    %509 = vadd.xlane.f32.xlu0 %v508
    %v510 = vpop.xlane.xlu0 %509
    %v511 = vsel %vm453, %v440, 0.0
    %512 = vadd.xlane.f32.xlu0 %v511
    %v513 = vpop.xlane.xlu0 %512
    %v514 = vsel %vm453, %v441, 0.0
    %515 = vadd.xlane.f32.xlu0 %v514
    %v516 = vpop.xlane.xlu0 %515
    %v517 = vsel %vm453, %v442, 0.0
    %518 = vadd.xlane.f32.xlu0 %v517
    %v519 = vpop.xlane.xlu0 %518
    %v520 = vsel %vm453, %v443, 0.0
    %521 = vadd.xlane.f32.xlu0 %v520
    %v522 = vpop.xlane.xlu0 %521
    %v523 = vsel %vm453, %v444, 0.0
    %524 = vadd.xlane.f32.xlu0 %v523
    %v525 = vpop.xlane.xlu0 %524
    %v526 = vsel %vm453, %v445, 0.0
    %527 = vadd.xlane.f32.xlu0 %v526
    %v528 = vpop.xlane.xlu0 %527
    %v529 = vsel %vm453, %v446, 0.0
    %530 = vadd.xlane.f32.xlu0 %v529
    %v531 = vpop.xlane.xlu0 %530
    %v532 = vsel %vm453, %v447, 0.0
    %533 = vadd.xlane.f32.xlu0 %v532
    %v534 = vpop.xlane.xlu0 %533
    %v535 = vsel %vm453, %v448, 0.0
    %536 = vadd.xlane.f32.xlu0 %v535
    %v537 = vpop.xlane.xlu0 %536
    %v538 = vsel %vm453, %v449, 0.0
    %539 = vadd.xlane.f32.xlu0 %v538
    %v540 = vpop.xlane.xlu0 %539
    %v541 = vsel %vm453, %v450, 0.0
    %542 = vadd.xlane.f32.xlu0 %v541
    %v543 = vpop.xlane.xlu0 %542
    %v544 = vsel %vm453, %v451, 0.0
    %545 = vadd.xlane.f32.xlu0 %v544
    %v546 = vpop.xlane.xlu0 %545
    %v547 = vsel %vm453, %v452, 0.0
    %548 = vadd.xlane.f32.xlu0 %v547
    %v549 = vpop.xlane.xlu0 %548
    %vm550 = vcmp.gt.f32.partialorder %v47, 0.0
    %vm551 = vcmp.gt.f32.partialorder %v48, 0.0
    %v584 = vlaneseq
    %v585 = vand.u32 %v584, 127
    %v586 = vlaneseq
    %v587 = vshrl.u32 %v586, 7
    %v588 = vsub.s32 %v585, %v587
    %v589 = vrot.slane %v456, %v588
    %v590 = vadd.s32 %v585, 4294967288
    %v591 = vlaneseq
    %v592 = vshrl.u32 %v591, 7
    %v593 = vsub.s32 %v590, %v592
    %v594 = vrot.slane %v459, %v593
    %vm595 = vcmask 130112
    %v596 = vsel %vm595, %v594, %v589
    %v597 = vlaneseq
    %v598 = vshrl.u32 %v597, 7
    %v599 = vsub.s32 %v585, %v598
    %v600 = vrot.slane %v462, %v599
    %v601 = vlaneseq
    %v602 = vshrl.u32 %v601, 7
    %v603 = vsub.s32 %v590, %v602
    %v604 = vrot.slane %v465, %v603
    %v605 = vsel %vm595, %v604, %v600
    %v606 = vlaneseq
    %v607 = vshrl.u32 %v606, 7
    %v608 = vsub.s32 %v585, %v607
    %v609 = vrot.slane %v468, %v608
    %v610 = vlaneseq
    %v611 = vshrl.u32 %v610, 7
    %v612 = vsub.s32 %v590, %v611
    %v613 = vrot.slane %v471, %v612
    %v614 = vsel %vm595, %v613, %v609
    %v615 = vlaneseq
    %v616 = vshrl.u32 %v615, 7
    %v617 = vsub.s32 %v585, %v616
    %v618 = vrot.slane %v474, %v617
    %v619 = vlaneseq
    %v620 = vshrl.u32 %v619, 7
    %v621 = vsub.s32 %v590, %v620
    %v622 = vrot.slane %v477, %v621
    %v623 = vsel %vm595, %v622, %v618
    %v624 = vlaneseq
    %v625 = vshrl.u32 %v624, 7
    %v626 = vsub.s32 %v585, %v625
    %v627 = vrot.slane %v480, %v626
    %v628 = vlaneseq
    %v629 = vshrl.u32 %v628, 7
    %v630 = vsub.s32 %v590, %v629
    %v631 = vrot.slane %v483, %v630
    %v632 = vsel %vm595, %v631, %v627
    %v633 = vlaneseq
    %v634 = vshrl.u32 %v633, 7
    %v635 = vsub.s32 %v585, %v634
    %v636 = vrot.slane %v486, %v635
    %v637 = vlaneseq
    %v638 = vshrl.u32 %v637, 7
    %v639 = vsub.s32 %v590, %v638
    %v640 = vrot.slane %v489, %v639
    %v641 = vsel %vm595, %v640, %v636
    %v642 = vlaneseq
    %v643 = vshrl.u32 %v642, 7
    %v644 = vsub.s32 %v585, %v643
    %v645 = vrot.slane %v492, %v644
    %v646 = vlaneseq
    %v647 = vshrl.u32 %v646, 7
    %v648 = vsub.s32 %v590, %v647
    %v649 = vrot.slane %v495, %v648
    %v650 = vsel %vm595, %v649, %v645
    %v651 = vlaneseq
    %v652 = vshrl.u32 %v651, 7
    %v653 = vsub.s32 %v585, %v652
    %v654 = vrot.slane %v498, %v653
    %v655 = vlaneseq
    %v656 = vshrl.u32 %v655, 7
    %v657 = vsub.s32 %v590, %v656
    %v658 = vrot.slane %v501, %v657
    %v659 = vsel %vm595, %v658, %v654
    %v660 = vlaneseq
    %v661 = vshrl.u32 %v660, 7
    %v662 = vsub.s32 %v585, %v661
    %v663 = vrot.slane %v504, %v662
    %v664 = vlaneseq
    %v665 = vshrl.u32 %v664, 7
    %v666 = vsub.s32 %v590, %v665
    %v667 = vrot.slane %v507, %v666
    %v668 = vsel %vm595, %v667, %v663
    %v669 = vlaneseq
    %v670 = vshrl.u32 %v669, 7
    %v671 = vsub.s32 %v585, %v670
    %v672 = vrot.slane %v510, %v671
    %v673 = vlaneseq
    %v674 = vshrl.u32 %v673, 7
    %v675 = vsub.s32 %v590, %v674
    %v676 = vrot.slane %v513, %v675
    %v677 = vsel %vm595, %v676, %v672
    %v678 = vlaneseq
    %v679 = vshrl.u32 %v678, 7
    %v680 = vsub.s32 %v585, %v679
    %v681 = vrot.slane %v516, %v680
    %v682 = vlaneseq
    %v683 = vshrl.u32 %v682, 7
    %v684 = vsub.s32 %v590, %v683
    %v685 = vrot.slane %v519, %v684
    %v686 = vsel %vm595, %v685, %v681
    %v687 = vlaneseq
    %v688 = vshrl.u32 %v687, 7
    %v689 = vsub.s32 %v585, %v688
    %v690 = vrot.slane %v522, %v689
    %v691 = vlaneseq
    %v692 = vshrl.u32 %v691, 7
    %v693 = vsub.s32 %v590, %v692
    %v694 = vrot.slane %v525, %v693
    %v695 = vsel %vm595, %v694, %v690
    %v696 = vlaneseq
    %v697 = vshrl.u32 %v696, 7
    %v698 = vsub.s32 %v585, %v697
    %v699 = vrot.slane %v528, %v698
    %v700 = vlaneseq
    %v701 = vshrl.u32 %v700, 7
    %v702 = vsub.s32 %v590, %v701
    %v703 = vrot.slane %v531, %v702
    %v704 = vsel %vm595, %v703, %v699
    %v705 = vlaneseq
    %v706 = vshrl.u32 %v705, 7
    %v707 = vsub.s32 %v585, %v706
    %v708 = vrot.slane %v534, %v707
    %v709 = vlaneseq
    %v710 = vshrl.u32 %v709, 7
    %v711 = vsub.s32 %v590, %v710
    %v712 = vrot.slane %v537, %v711
    %v713 = vsel %vm595, %v712, %v708
    %v714 = vlaneseq
    %v715 = vshrl.u32 %v714, 7
    %v716 = vsub.s32 %v585, %v715
    %v717 = vrot.slane %v540, %v716
    %v718 = vlaneseq
    %v719 = vshrl.u32 %v718, 7
    %v720 = vsub.s32 %v590, %v719
    %v721 = vrot.slane %v543, %v720
    %v722 = vsel %vm595, %v721, %v717
    %v723 = vlaneseq
    %v724 = vshrl.u32 %v723, 7
    %v725 = vsub.s32 %v585, %v724
    %v726 = vrot.slane %v546, %v725
    %v727 = vlaneseq
    %v728 = vshrl.u32 %v727, 7
    %v729 = vsub.s32 %v590, %v728
    %v730 = vrot.slane %v549, %v729
    %v731 = vsel %vm595, %v730, %v726
    %vm732 = vcmask 1041409
    %v733 = vsel %vm732, %v605, %v596
    %vm734 = vcmask 1042434
    %v735 = vsel %vm734, %v614, %v733
    %vm736 = vcmask 1043459
    %v737 = vsel %vm736, %v623, %v735
    %vm738 = vcmask 1044484
    %v739 = vsel %vm738, %v632, %v737
    %vm740 = vcmask 1045509
    %v741 = vsel %vm740, %v641, %v739
    %vm742 = vcmask 1046534
    %v743 = vsel %vm742, %v650, %v741
    %vm744 = vcmask 1047559
    %v745 = vsel %vm744, %v659, %v743
    %v746 = vsel %vm732, %v677, %v668
    %v747 = vsel %vm734, %v686, %v746
    %v748 = vsel %vm736, %v695, %v747
    %v749 = vsel %vm738, %v704, %v748
    %v750 = vsel %vm740, %v713, %v749
    %v751 = vsel %vm742, %v722, %v750
    %v752 = vsel %vm744, %v731, %v751
    %v755 = vsel %vm550, %v745, -1e+09
    %v756 = vsel %vm551, %v752, -1e+09
    %vm757 = vcmask 130048
    %v758 = vsel %vm757, %v755, -inf
    %759 = vmax.xlane.f32.xlu0 %v758
    %v760 = vpop.xlane.xlu0 %759
    %v761 = vsel %vm757, %v756, -inf
    %762 = vmax.xlane.f32.xlu0 %v761
    %v763 = vpop.xlane.xlu0 %762
    %v764 = vsub.f32 %v755, %v760
    %v765 = vsub.f32 %v756, %v763
    %v766 = vmul.f32 %v764, 1.442695
    %v767 = vpow.pop %v766
    %v768 = vmul.f32 %v765, 1.442695
    %v769 = vpow.pop %v768
    %v770 = vmul.f32 %v767, %v47
    %v771 = vmul.f32 %v769, %v48
    %v772 = vsel %vm757, %v770, 0.0
    %773 = vadd.xlane.f32.xlu0 %v772
    %v774 = vpop.xlane.xlu0 %773
    %v775 = vsel %vm757, %v771, 0.0
    %776 = vadd.xlane.f32.xlu0 %v775
    %v777 = vpop.xlane.xlu0 %776
    %vm778 = vcmp.gt.f32.partialorder %v774, 0.0
    %vm779 = vcmp.gt.f32.partialorder %v777, 0.0
    %v780 = vsel %vm778, %v774, 1.0
    %v781 = vsel %vm779, %v777, 1.0
    %v782 = vrcp.pop %v780
    %v783 = vrcp.pop %v781
    %v784 = vmul.f32 %v770, %v782
    %v785 = vmul.f32 %v771, %v783
    %v786 = vpack.c.bf16 %v785, %v784
    %v787 = vpack.c.bf16 %v106, %v103
    %v788 = vlaneseq
    %v789 = vshrl.u32 %v788, 7
    %v790 = vsub.s32 0, %v789
    %v791 = vrot.slane %v54, %v790
    %v793 = vsel %vm757, %v786, 0
    %795 = vmatprep.subr.bf16.mxu0 0
    %796 = vmatpush1.bf16.msra.mxu0 0
    %797 = vmatprep.subr.bf16.mxu0 0
    %798 = vmatpush1.bf16.msra.mxu0 0
    %799 = vmatprep.subr.bf16.mxu0 0
    %800 = vmatpush1.bf16.msra.mxu0 0
    %801 = vmatprep.subr.bf16.mxu0 0
    %802 = vmatpush1.bf16.msra.mxu0 0
    %803 = vmatprep.subr.bf16.mxu0 0
    %804 = vmatpush1.bf16.msra.mxu0 0
    %805 = vmatprep.subr.bf16.mxu0 0
    %806 = vmatpush1.bf16.msra.mxu0 0
    %807 = vmatprep.subr.bf16.mxu0 0
    %808 = vmatpush1.bf16.msra.mxu0 0
    %809 = vmatprep.subr.bf16.mxu0 0
    %810 = vmatpush1.bf16.msra.mxu0 %v787
    %811 = vmatprep.subr.bf16.mxu0 0
    %812 = vmatpush2.bf16.msra.mxu0 0
    %813 = vmatprep.subr.bf16.mxu0 0
    %814 = vmatpush2.bf16.msra.mxu0 0
    %815 = vmatprep.subr.bf16.mxu0 0
    %816 = vmatpush2.bf16.msra.mxu0 0
    %817 = vmatprep.subr.bf16.mxu0 0
    %818 = vmatpush2.bf16.msra.mxu0 0
    %819 = vmatprep.subr.bf16.mxu0 0
    %820 = vmatpush2.bf16.msra.mxu0 0
    %821 = vmatprep.subr.bf16.mxu0 0
    %822 = vmatpush2.bf16.msra.mxu0 0
    %823 = vmatprep.subr.bf16.mxu0 0
    %824 = vmatpush2.bf16.msra.mxu0 0
    %825 = vmatprep.subr.bf16.mxu0 0
    %826 = vmatpush2.bf16.msra.mxu0 0
    %827 = vmatprep.mubr.bf16.mxu0 0
    %828 = vmatmul.mubr.bf16.gmra.mxu0 %v793
    %v829 = vpop.f32.mrf.mxu0
    %v830 = vadd.f32 %v791, %v829
    %v831 = vpop.f32.mrf.mxu0
    %v832 = vpop.f32.mrf.mxu0
    %v833 = vadd.f32 %v791, %v832
    %v834 = vpop.f32.mrf.mxu0
    %835 = vdwg.mxu0
    %v836 = vmax.f32 %v830, 0.0
    %v837 = vmax.f32 %v833, 0.0
    %v838 = vld [vmem:[#allocation2 + $0x8] sm:$0xf]
    %v839 = vld [vmem:[#allocation2 + $0xc] sm:$0xf]
    %v840 = vld [vmem:[#allocation2 + $0x10] sm:$0xf]
    %v841 = vld [vmem:[#allocation2 + $0x14] sm:$0xf]
    %v842 = vld [vmem:[#allocation5 + $0x3] sm:$0x1]
    %v843 = vld [vmem:[#allocation5 + $0x4] sm:$0x1]
    %v844 = vld [vmem:[#allocation5 + $0x5] sm:$0x1]
    %v845 = vpack.c.bf16 %v837, %v836
    %v846 = vlaneseq
    %v847 = vshrl.u32 %v846, 7
    %v848 = vsub.s32 0, %v847
    %v849 = vrot.slane %v842, %v848
    %v854 = vunpack.c.l.b16 %v838
    %v855 = vunpack.c.l.b16 %v839
    %v856 = vunpack.c.l.b16 %v840
    %v857 = vunpack.c.l.b16 %v841
    %v858 = vpack.c.b16 %v855, %v854
    %v859 = vpack.c.b16 %v857, %v856
    %v863 = vsel %vm453, %v845, 0
    %865 = vmatprep.subr.bf16.mxu0 0
    %866 = vmatpush1.bf16.msra.mxu0 0
    %867 = vmatprep.subr.bf16.mxu0 0
    %868 = vmatpush1.bf16.msra.mxu0 0
    %869 = vmatprep.subr.bf16.mxu0 0
    %870 = vmatpush1.bf16.msra.mxu0 0
    %871 = vmatprep.subr.bf16.mxu0 0
    %872 = vmatpush1.bf16.msra.mxu0 0
    %873 = vmatprep.subr.bf16.mxu0 0
    %874 = vmatpush1.bf16.msra.mxu0 0
    %875 = vmatprep.subr.bf16.mxu0 0
    %876 = vmatpush1.bf16.msra.mxu0 0
    %877 = vmatprep.subr.bf16.mxu0 0
    %878 = vmatpush1.bf16.msra.mxu0 %v859
    %879 = vmatprep.subr.bf16.mxu0 0
    %880 = vmatpush1.bf16.msra.mxu0 %v858
    %881 = vmatprep.subr.bf16.mxu0 0
    %882 = vmatpush2.bf16.msra.mxu0 0
    %883 = vmatprep.subr.bf16.mxu0 0
    %884 = vmatpush2.bf16.msra.mxu0 0
    %885 = vmatprep.subr.bf16.mxu0 0
    %886 = vmatpush2.bf16.msra.mxu0 0
    %887 = vmatprep.subr.bf16.mxu0 0
    %888 = vmatpush2.bf16.msra.mxu0 0
    %889 = vmatprep.subr.bf16.mxu0 0
    %890 = vmatpush2.bf16.msra.mxu0 0
    %891 = vmatprep.subr.bf16.mxu0 0
    %892 = vmatpush2.bf16.msra.mxu0 0
    %893 = vmatprep.subr.bf16.mxu0 0
    %894 = vmatpush2.bf16.msra.mxu0 0
    %895 = vmatprep.subr.bf16.mxu0 0
    %896 = vmatpush2.bf16.msra.mxu0 0
    %897 = vmatprep.mubr.bf16.mxu0 0
    %898 = vmatmul.mubr.bf16.gmra.mxu0 %v863
    %v899 = vpop.f32.mrf.mxu0
    %v900 = vadd.f32 %v849, %v899
    %v901 = vpop.f32.mrf.mxu0
    %v902 = vpop.f32.mrf.mxu0
    %v903 = vadd.f32 %v849, %v902
    %v904 = vpop.f32.mrf.mxu0
    %905 = vdwg.mxu0
    %v908 = vcombine.high %v900, %v900
    %v910 = vunpack.c.l.s4 1966171168
    %v911 = vunpack.c.0.s8 %v910
    %v912 = vlaneseq
    %v913 = vshrl.u32 %v912, 7
    %v914 = vsub.s32 %v911, %v913
    %v915 = vrot.slane %v900, %v914
    %v917 = vunpack.c.l.s4 1966171168
    %v918 = vunpack.c.0.s8 %v917
    %v919 = vlaneseq
    %v920 = vshrl.u32 %v919, 7
    %v921 = vsub.s32 %v918, %v920
    %v922 = vrot.slane %v908, %v921
    %v923 = vcombine.high %v915, %v915
    %v924 = vcombine.high %v922, %v922
    %v926 = vunpack.c.l.s4 1966171168
    %v927 = vunpack.c.0.s8 %v926
    %v928 = vlaneseq
    %v929 = vshrl.u32 %v928, 7
    %v930 = vsub.s32 %v927, %v929
    %v931 = vrot.slane %v915, %v930
    %v933 = vunpack.c.l.s4 1966171168
    %v934 = vunpack.c.0.s8 %v933
    %v935 = vlaneseq
    %v936 = vshrl.u32 %v935, 7
    %v937 = vsub.s32 %v934, %v936
    %v938 = vrot.slane %v922, %v937
    %v940 = vunpack.c.l.s4 1966171168
    %v941 = vunpack.c.0.s8 %v940
    %v942 = vlaneseq
    %v943 = vshrl.u32 %v942, 7
    %v944 = vsub.s32 %v941, %v943
    %v945 = vrot.slane %v923, %v944
    %v947 = vunpack.c.l.s4 1966171168
    %v948 = vunpack.c.0.s8 %v947
    %v949 = vlaneseq
    %v950 = vshrl.u32 %v949, 7
    %v951 = vsub.s32 %v948, %v950
    %v952 = vrot.slane %v924, %v951
    %v953 = vcombine.high %v931, %v931
    %v954 = vcombine.high %v938, %v938
    %v955 = vcombine.high %v945, %v945
    %v956 = vcombine.high %v952, %v952
    %v957 = vcombine.high %v903, %v903
    %v959 = vunpack.c.l.s4 1966171168
    %v960 = vunpack.c.0.s8 %v959
    %v961 = vlaneseq
    %v962 = vshrl.u32 %v961, 7
    %v963 = vsub.s32 %v960, %v962
    %v964 = vrot.slane %v903, %v963
    %v966 = vunpack.c.l.s4 1966171168
    %v967 = vunpack.c.0.s8 %v966
    %v968 = vlaneseq
    %v969 = vshrl.u32 %v968, 7
    %v970 = vsub.s32 %v967, %v969
    %v971 = vrot.slane %v957, %v970
    %v972 = vcombine.high %v964, %v964
    %v973 = vcombine.high %v971, %v971
    %v975 = vunpack.c.l.s4 1966171168
    %v976 = vunpack.c.0.s8 %v975
    %v977 = vlaneseq
    %v978 = vshrl.u32 %v977, 7
    %v979 = vsub.s32 %v976, %v978
    %v980 = vrot.slane %v964, %v979
    %v982 = vunpack.c.l.s4 1966171168
    %v983 = vunpack.c.0.s8 %v982
    %v984 = vlaneseq
    %v985 = vshrl.u32 %v984, 7
    %v986 = vsub.s32 %v983, %v985
    %v987 = vrot.slane %v971, %v986
    %v989 = vunpack.c.l.s4 1966171168
    %v990 = vunpack.c.0.s8 %v989
    %v991 = vlaneseq
    %v992 = vshrl.u32 %v991, 7
    %v993 = vsub.s32 %v990, %v992
    %v994 = vrot.slane %v972, %v993
    %v996 = vunpack.c.l.s4 1966171168
    %v997 = vunpack.c.0.s8 %v996
    %v998 = vlaneseq
    %v999 = vshrl.u32 %v998, 7
    %v1000 = vsub.s32 %v997, %v999
    %v1001 = vrot.slane %v973, %v1000
    %v1002 = vcombine.high %v980, %v980
    %v1003 = vcombine.high %v987, %v987
    %v1004 = vcombine.high %v994, %v994
    %v1005 = vcombine.high %v1001, %v1001
    %v1006 = vlaneseq
    %v1007 = vshrl.u32 %v1006, 7
    %v1008 = vsub.s32 0, %v1007
    %v1009 = vrot.slane %v931, %v1008
    %v1010 = vlaneseq
    %v1011 = vshrl.u32 %v1010, 7
    %v1012 = vsub.s32 0, %v1011
    %v1013 = vrot.slane %v945, %v1012
    %v1014 = vlaneseq
    %v1015 = vshrl.u32 %v1014, 7
    %v1016 = vsub.s32 0, %v1015
    %v1017 = vrot.slane %v953, %v1016
    %v1018 = vlaneseq
    %v1019 = vshrl.u32 %v1018, 7
    %v1020 = vsub.s32 0, %v1019
    %v1021 = vrot.slane %v955, %v1020
    %v1022 = vlaneseq
    %v1023 = vshrl.u32 %v1022, 7
    %v1024 = vsub.s32 0, %v1023
    %v1025 = vrot.slane %v938, %v1024
    %v1026 = vlaneseq
    %v1027 = vshrl.u32 %v1026, 7
    %v1028 = vsub.s32 0, %v1027
    %v1029 = vrot.slane %v952, %v1028
    %v1030 = vlaneseq
    %v1031 = vshrl.u32 %v1030, 7
    %v1032 = vsub.s32 0, %v1031
    %v1033 = vrot.slane %v954, %v1032
    %v1034 = vlaneseq
    %v1035 = vshrl.u32 %v1034, 7
    %v1036 = vsub.s32 0, %v1035
    %v1037 = vrot.slane %v956, %v1036
    %v1038 = vlaneseq
    %v1039 = vshrl.u32 %v1038, 7
    %v1040 = vsub.s32 0, %v1039
    %v1041 = vrot.slane %v980, %v1040
    %v1042 = vlaneseq
    %v1043 = vshrl.u32 %v1042, 7
    %v1044 = vsub.s32 0, %v1043
    %v1045 = vrot.slane %v994, %v1044
    %v1046 = vlaneseq
    %v1047 = vshrl.u32 %v1046, 7
    %v1048 = vsub.s32 0, %v1047
    %v1049 = vrot.slane %v1002, %v1048
    %v1050 = vlaneseq
    %v1051 = vshrl.u32 %v1050, 7
    %v1052 = vsub.s32 0, %v1051
    %v1053 = vrot.slane %v1004, %v1052
    %v1054 = vlaneseq
    %v1055 = vshrl.u32 %v1054, 7
    %v1056 = vsub.s32 0, %v1055
    %v1057 = vrot.slane %v987, %v1056
    %v1058 = vlaneseq
    %v1059 = vshrl.u32 %v1058, 7
    %v1060 = vsub.s32 0, %v1059
    %v1061 = vrot.slane %v1001, %v1060
    %v1062 = vlaneseq
    %v1063 = vshrl.u32 %v1062, 7
    %v1064 = vsub.s32 0, %v1063
    %v1065 = vrot.slane %v1003, %v1064
    %v1066 = vlaneseq
    %v1067 = vshrl.u32 %v1066, 7
    %v1068 = vsub.s32 0, %v1067
    %v1069 = vrot.slane %v1005, %v1068
    %1070 = vrot.lane.b32.xlu0 %v1009, 96
    %v1071 = vpop.permute.xlu0 %1070
    %1072 = vrot.lane.b32.xlu0 %v1013, 96
    %v1073 = vpop.permute.xlu0 %1072
    %1074 = vrot.lane.b32.xlu0 %v1017, 96
    %v1075 = vpop.permute.xlu0 %1074
    %1076 = vrot.lane.b32.xlu0 %v1021, 96
    %v1077 = vpop.permute.xlu0 %1076
    %1078 = vrot.lane.b32.xlu0 %v1025, 96
    %v1079 = vpop.permute.xlu0 %1078
    %1080 = vrot.lane.b32.xlu0 %v1029, 96
    %v1081 = vpop.permute.xlu0 %1080
    %1082 = vrot.lane.b32.xlu0 %v1033, 96
    %v1083 = vpop.permute.xlu0 %1082
    %1084 = vrot.lane.b32.xlu0 %v1037, 96
    %v1085 = vpop.permute.xlu0 %1084
    %1086 = vrot.lane.b32.xlu0 %v1041, 96
    %v1087 = vpop.permute.xlu0 %1086
    %1088 = vrot.lane.b32.xlu0 %v1045, 96
    %v1089 = vpop.permute.xlu0 %1088
    %1090 = vrot.lane.b32.xlu0 %v1049, 96
    %v1091 = vpop.permute.xlu0 %1090
    %1092 = vrot.lane.b32.xlu0 %v1053, 96
    %v1093 = vpop.permute.xlu0 %1092
    %1094 = vrot.lane.b32.xlu0 %v1057, 96
    %v1095 = vpop.permute.xlu0 %1094
    %1096 = vrot.lane.b32.xlu0 %v1061, 96
    %v1097 = vpop.permute.xlu0 %1096
    %1098 = vrot.lane.b32.xlu0 %v1065, 96
    %v1099 = vpop.permute.xlu0 %1098
    %1100 = vrot.lane.b32.xlu0 %v1069, 96
    %v1101 = vpop.permute.xlu0 %1100
    %v1118 = vadd.f32 %v900, %v1071
    %v1119 = vadd.f32 %v903, %v1071
    %v1120 = vadd.f32 %v900, %v1073
    %v1121 = vadd.f32 %v903, %v1073
    %v1122 = vadd.f32 %v900, %v1075
    %v1123 = vadd.f32 %v903, %v1075
    %v1124 = vadd.f32 %v900, %v1077
    %v1125 = vadd.f32 %v903, %v1077
    %v1126 = vadd.f32 %v900, %v1079
    %v1127 = vadd.f32 %v903, %v1079
    %v1128 = vadd.f32 %v900, %v1081
    %v1129 = vadd.f32 %v903, %v1081
    %v1130 = vadd.f32 %v900, %v1083
    %v1131 = vadd.f32 %v903, %v1083
    %v1132 = vadd.f32 %v900, %v1085
    %v1133 = vadd.f32 %v903, %v1085
    %v1134 = vadd.f32 %v900, %v1087
    %v1135 = vadd.f32 %v903, %v1087
    %v1136 = vadd.f32 %v900, %v1089
    %v1137 = vadd.f32 %v903, %v1089
    %v1138 = vadd.f32 %v900, %v1091
    %v1139 = vadd.f32 %v903, %v1091
    %v1140 = vadd.f32 %v900, %v1093
    %v1141 = vadd.f32 %v903, %v1093
    %v1142 = vadd.f32 %v900, %v1095
    %v1143 = vadd.f32 %v903, %v1095
    %v1144 = vadd.f32 %v900, %v1097
    %v1145 = vadd.f32 %v903, %v1097
    %v1146 = vadd.f32 %v900, %v1099
    %v1147 = vadd.f32 %v903, %v1099
    %v1148 = vadd.f32 %v900, %v1101
    %v1149 = vadd.f32 %v903, %v1101
    %v1150 = vmul.f32 %v1118, 0.2
    %v1151 = vmul.f32 %v1119, 0.2
    %v1152 = vmul.f32 %v1120, 0.2
    %v1153 = vmul.f32 %v1121, 0.2
    %v1154 = vmul.f32 %v1122, 0.2
    %v1155 = vmul.f32 %v1123, 0.2
    %v1156 = vmul.f32 %v1124, 0.2
    %v1157 = vmul.f32 %v1125, 0.2
    %v1158 = vmul.f32 %v1126, 0.2
    %v1159 = vmul.f32 %v1127, 0.2
    %v1160 = vmul.f32 %v1128, 0.2
    %v1161 = vmul.f32 %v1129, 0.2
    %v1162 = vmul.f32 %v1130, 0.2
    %v1163 = vmul.f32 %v1131, 0.2
    %v1164 = vmul.f32 %v1132, 0.2
    %v1165 = vmul.f32 %v1133, 0.2
    %v1166 = vmul.f32 %v1134, 0.2
    %v1167 = vmul.f32 %v1135, 0.2
    %v1168 = vmul.f32 %v1136, 0.2
    %v1169 = vmul.f32 %v1137, 0.2
    %v1170 = vmul.f32 %v1138, 0.2
    %v1171 = vmul.f32 %v1139, 0.2
    %v1172 = vmul.f32 %v1140, 0.2
    %v1173 = vmul.f32 %v1141, 0.2
    %v1174 = vmul.f32 %v1142, 0.2
    %v1175 = vmul.f32 %v1143, 0.2
    %v1176 = vmul.f32 %v1144, 0.2
    %v1177 = vmul.f32 %v1145, 0.2
    %v1178 = vmul.f32 %v1146, 0.2
    %v1179 = vmul.f32 %v1147, 0.2
    %v1180 = vmul.f32 %v1148, 0.2
    %v1181 = vmul.f32 %v1149, 0.2
    %v1182 = vmax.f32 %v1118, %v1150
    %v1183 = vmax.f32 %v1119, %v1151
    %v1184 = vmax.f32 %v1120, %v1152
    %v1185 = vmax.f32 %v1121, %v1153
    %v1186 = vmax.f32 %v1122, %v1154
    %v1187 = vmax.f32 %v1123, %v1155
    %v1188 = vmax.f32 %v1124, %v1156
    %v1189 = vmax.f32 %v1125, %v1157
    %v1190 = vmax.f32 %v1126, %v1158
    %v1191 = vmax.f32 %v1127, %v1159
    %v1192 = vmax.f32 %v1128, %v1160
    %v1193 = vmax.f32 %v1129, %v1161
    %v1194 = vmax.f32 %v1130, %v1162
    %v1195 = vmax.f32 %v1131, %v1163
    %v1196 = vmax.f32 %v1132, %v1164
    %v1197 = vmax.f32 %v1133, %v1165
    %v1198 = vmax.f32 %v1134, %v1166
    %v1199 = vmax.f32 %v1135, %v1167
    %v1200 = vmax.f32 %v1136, %v1168
    %v1201 = vmax.f32 %v1137, %v1169
    %v1202 = vmax.f32 %v1138, %v1170
    %v1203 = vmax.f32 %v1139, %v1171
    %v1204 = vmax.f32 %v1140, %v1172
    %v1205 = vmax.f32 %v1141, %v1173
    %v1206 = vmax.f32 %v1142, %v1174
    %v1207 = vmax.f32 %v1143, %v1175
    %v1208 = vmax.f32 %v1144, %v1176
    %v1209 = vmax.f32 %v1145, %v1177
    %v1210 = vmax.f32 %v1146, %v1178
    %v1211 = vmax.f32 %v1147, %v1179
    %v1212 = vmax.f32 %v1148, %v1180
    %v1213 = vmax.f32 %v1149, %v1181
    %v1214 = vlaneseq
    %v1215 = vshrl.u32 %v1214, 7
    %v1216 = vsub.s32 0, %v1215
    %v1217 = vrot.slane %v843, %v1216
    %v1218 = vmul.f32 %v1182, %v1217
    %v1219 = vmul.f32 %v1183, %v1217
    %v1220 = vmul.f32 %v1184, %v1217
    %v1221 = vmul.f32 %v1185, %v1217
    %v1222 = vmul.f32 %v1186, %v1217
    %v1223 = vmul.f32 %v1187, %v1217
    %v1224 = vmul.f32 %v1188, %v1217
    %v1225 = vmul.f32 %v1189, %v1217
    %v1226 = vmul.f32 %v1190, %v1217
    %v1227 = vmul.f32 %v1191, %v1217
    %v1228 = vmul.f32 %v1192, %v1217
    %v1229 = vmul.f32 %v1193, %v1217
    %v1230 = vmul.f32 %v1194, %v1217
    %v1231 = vmul.f32 %v1195, %v1217
    %v1232 = vmul.f32 %v1196, %v1217
    %v1233 = vmul.f32 %v1197, %v1217
    %v1234 = vmul.f32 %v1198, %v1217
    %v1235 = vmul.f32 %v1199, %v1217
    %v1236 = vmul.f32 %v1200, %v1217
    %v1237 = vmul.f32 %v1201, %v1217
    %v1238 = vmul.f32 %v1202, %v1217
    %v1239 = vmul.f32 %v1203, %v1217
    %v1240 = vmul.f32 %v1204, %v1217
    %v1241 = vmul.f32 %v1205, %v1217
    %v1242 = vmul.f32 %v1206, %v1217
    %v1243 = vmul.f32 %v1207, %v1217
    %v1244 = vmul.f32 %v1208, %v1217
    %v1245 = vmul.f32 %v1209, %v1217
    %v1246 = vmul.f32 %v1210, %v1217
    %v1247 = vmul.f32 %v1211, %v1217
    %v1248 = vmul.f32 %v1212, %v1217
    %v1249 = vmul.f32 %v1213, %v1217
    %v1250 = vsel %vm453, %v1218, 0.0
    %1251 = vadd.xlane.f32.xlu0 %v1250
    %v1252 = vpop.xlane.xlu0 %1251
    %v1253 = vsel %vm453, %v1219, 0.0
    %1254 = vadd.xlane.f32.xlu0 %v1253
    %v1255 = vpop.xlane.xlu0 %1254
    %v1256 = vsel %vm453, %v1220, 0.0
    %1257 = vadd.xlane.f32.xlu0 %v1256
    %v1258 = vpop.xlane.xlu0 %1257
    %v1259 = vsel %vm453, %v1221, 0.0
    %1260 = vadd.xlane.f32.xlu0 %v1259
    %v1261 = vpop.xlane.xlu0 %1260
    %v1262 = vsel %vm453, %v1222, 0.0
    %1263 = vadd.xlane.f32.xlu0 %v1262
    %v1264 = vpop.xlane.xlu0 %1263
    %v1265 = vsel %vm453, %v1223, 0.0
    %1266 = vadd.xlane.f32.xlu0 %v1265
    %v1267 = vpop.xlane.xlu0 %1266
    %v1268 = vsel %vm453, %v1224, 0.0
    %1269 = vadd.xlane.f32.xlu0 %v1268
    %v1270 = vpop.xlane.xlu0 %1269
    %v1271 = vsel %vm453, %v1225, 0.0
    %1272 = vadd.xlane.f32.xlu0 %v1271
    %v1273 = vpop.xlane.xlu0 %1272
    %v1274 = vsel %vm453, %v1226, 0.0
    %1275 = vadd.xlane.f32.xlu0 %v1274
    %v1276 = vpop.xlane.xlu0 %1275
    %v1277 = vsel %vm453, %v1227, 0.0
    %1278 = vadd.xlane.f32.xlu0 %v1277
    %v1279 = vpop.xlane.xlu0 %1278
    %v1280 = vsel %vm453, %v1228, 0.0
    %1281 = vadd.xlane.f32.xlu0 %v1280
    %v1282 = vpop.xlane.xlu0 %1281
    %v1283 = vsel %vm453, %v1229, 0.0
    %1284 = vadd.xlane.f32.xlu0 %v1283
    %v1285 = vpop.xlane.xlu0 %1284
    %v1286 = vsel %vm453, %v1230, 0.0
    %1287 = vadd.xlane.f32.xlu0 %v1286
    %v1288 = vpop.xlane.xlu0 %1287
    %v1289 = vsel %vm453, %v1231, 0.0
    %1290 = vadd.xlane.f32.xlu0 %v1289
    %v1291 = vpop.xlane.xlu0 %1290
    %v1292 = vsel %vm453, %v1232, 0.0
    %1293 = vadd.xlane.f32.xlu0 %v1292
    %v1294 = vpop.xlane.xlu0 %1293
    %v1295 = vsel %vm453, %v1233, 0.0
    %1296 = vadd.xlane.f32.xlu0 %v1295
    %v1297 = vpop.xlane.xlu0 %1296
    %v1298 = vsel %vm453, %v1234, 0.0
    %1299 = vadd.xlane.f32.xlu0 %v1298
    %v1300 = vpop.xlane.xlu0 %1299
    %v1301 = vsel %vm453, %v1235, 0.0
    %1302 = vadd.xlane.f32.xlu0 %v1301
    %v1303 = vpop.xlane.xlu0 %1302
    %v1304 = vsel %vm453, %v1236, 0.0
    %1305 = vadd.xlane.f32.xlu0 %v1304
    %v1306 = vpop.xlane.xlu0 %1305
    %v1307 = vsel %vm453, %v1237, 0.0
    %1308 = vadd.xlane.f32.xlu0 %v1307
    %v1309 = vpop.xlane.xlu0 %1308
    %v1310 = vsel %vm453, %v1238, 0.0
    %1311 = vadd.xlane.f32.xlu0 %v1310
    %v1312 = vpop.xlane.xlu0 %1311
    %v1313 = vsel %vm453, %v1239, 0.0
    %1314 = vadd.xlane.f32.xlu0 %v1313
    %v1315 = vpop.xlane.xlu0 %1314
    %v1316 = vsel %vm453, %v1240, 0.0
    %1317 = vadd.xlane.f32.xlu0 %v1316
    %v1318 = vpop.xlane.xlu0 %1317
    %v1319 = vsel %vm453, %v1241, 0.0
    %1320 = vadd.xlane.f32.xlu0 %v1319
    %v1321 = vpop.xlane.xlu0 %1320
    %v1322 = vsel %vm453, %v1242, 0.0
    %1323 = vadd.xlane.f32.xlu0 %v1322
    %v1324 = vpop.xlane.xlu0 %1323
    %v1325 = vsel %vm453, %v1243, 0.0
    %1326 = vadd.xlane.f32.xlu0 %v1325
    %v1327 = vpop.xlane.xlu0 %1326
    %v1328 = vsel %vm453, %v1244, 0.0
    %1329 = vadd.xlane.f32.xlu0 %v1328
    %v1330 = vpop.xlane.xlu0 %1329
    %v1331 = vsel %vm453, %v1245, 0.0
    %1332 = vadd.xlane.f32.xlu0 %v1331
    %v1333 = vpop.xlane.xlu0 %1332
    %v1334 = vsel %vm453, %v1246, 0.0
    %1335 = vadd.xlane.f32.xlu0 %v1334
    %v1336 = vpop.xlane.xlu0 %1335
    %v1337 = vsel %vm453, %v1247, 0.0
    %1338 = vadd.xlane.f32.xlu0 %v1337
    %v1339 = vpop.xlane.xlu0 %1338
    %v1340 = vsel %vm453, %v1248, 0.0
    %1341 = vadd.xlane.f32.xlu0 %v1340
    %v1342 = vpop.xlane.xlu0 %1341
    %v1343 = vsel %vm453, %v1249, 0.0
    %1344 = vadd.xlane.f32.xlu0 %v1343
    %v1345 = vpop.xlane.xlu0 %1344
    %v1378 = vlaneseq
    %v1379 = vshrl.u32 %v1378, 7
    %v1380 = vsub.s32 %v585, %v1379
    %v1381 = vrot.slane %v1252, %v1380
    %v1382 = vlaneseq
    %v1383 = vshrl.u32 %v1382, 7
    %v1384 = vsub.s32 %v590, %v1383
    %v1385 = vrot.slane %v1255, %v1384
    %v1386 = vsel %vm595, %v1385, %v1381
    %v1387 = vlaneseq
    %v1388 = vshrl.u32 %v1387, 7
    %v1389 = vsub.s32 %v585, %v1388
    %v1390 = vrot.slane %v1258, %v1389
    %v1391 = vlaneseq
    %v1392 = vshrl.u32 %v1391, 7
    %v1393 = vsub.s32 %v590, %v1392
    %v1394 = vrot.slane %v1261, %v1393
    %v1395 = vsel %vm595, %v1394, %v1390
    %v1396 = vlaneseq
    %v1397 = vshrl.u32 %v1396, 7
    %v1398 = vsub.s32 %v585, %v1397
    %v1399 = vrot.slane %v1264, %v1398
    %v1400 = vlaneseq
    %v1401 = vshrl.u32 %v1400, 7
    %v1402 = vsub.s32 %v590, %v1401
    %v1403 = vrot.slane %v1267, %v1402
    %v1404 = vsel %vm595, %v1403, %v1399
    %v1405 = vlaneseq
    %v1406 = vshrl.u32 %v1405, 7
    %v1407 = vsub.s32 %v585, %v1406
    %v1408 = vrot.slane %v1270, %v1407
    %v1409 = vlaneseq
    %v1410 = vshrl.u32 %v1409, 7
    %v1411 = vsub.s32 %v590, %v1410
    %v1412 = vrot.slane %v1273, %v1411
    %v1413 = vsel %vm595, %v1412, %v1408
    %v1414 = vlaneseq
    %v1415 = vshrl.u32 %v1414, 7
    %v1416 = vsub.s32 %v585, %v1415
    %v1417 = vrot.slane %v1276, %v1416
    %v1418 = vlaneseq
    %v1419 = vshrl.u32 %v1418, 7
    %v1420 = vsub.s32 %v590, %v1419
    %v1421 = vrot.slane %v1279, %v1420
    %v1422 = vsel %vm595, %v1421, %v1417
    %v1423 = vlaneseq
    %v1424 = vshrl.u32 %v1423, 7
    %v1425 = vsub.s32 %v585, %v1424
    %v1426 = vrot.slane %v1282, %v1425
    %v1427 = vlaneseq
    %v1428 = vshrl.u32 %v1427, 7
    %v1429 = vsub.s32 %v590, %v1428
    %v1430 = vrot.slane %v1285, %v1429
    %v1431 = vsel %vm595, %v1430, %v1426
    %v1432 = vlaneseq
    %v1433 = vshrl.u32 %v1432, 7
    %v1434 = vsub.s32 %v585, %v1433
    %v1435 = vrot.slane %v1288, %v1434
    %v1436 = vlaneseq
    %v1437 = vshrl.u32 %v1436, 7
    %v1438 = vsub.s32 %v590, %v1437
    %v1439 = vrot.slane %v1291, %v1438
    %v1440 = vsel %vm595, %v1439, %v1435
    %v1441 = vlaneseq
    %v1442 = vshrl.u32 %v1441, 7
    %v1443 = vsub.s32 %v585, %v1442
    %v1444 = vrot.slane %v1294, %v1443
    %v1445 = vlaneseq
    %v1446 = vshrl.u32 %v1445, 7
    %v1447 = vsub.s32 %v590, %v1446
    %v1448 = vrot.slane %v1297, %v1447
    %v1449 = vsel %vm595, %v1448, %v1444
    %v1450 = vlaneseq
    %v1451 = vshrl.u32 %v1450, 7
    %v1452 = vsub.s32 %v585, %v1451
    %v1453 = vrot.slane %v1300, %v1452
    %v1454 = vlaneseq
    %v1455 = vshrl.u32 %v1454, 7
    %v1456 = vsub.s32 %v590, %v1455
    %v1457 = vrot.slane %v1303, %v1456
    %v1458 = vsel %vm595, %v1457, %v1453
    %v1459 = vlaneseq
    %v1460 = vshrl.u32 %v1459, 7
    %v1461 = vsub.s32 %v585, %v1460
    %v1462 = vrot.slane %v1306, %v1461
    %v1463 = vlaneseq
    %v1464 = vshrl.u32 %v1463, 7
    %v1465 = vsub.s32 %v590, %v1464
    %v1466 = vrot.slane %v1309, %v1465
    %v1467 = vsel %vm595, %v1466, %v1462
    %v1468 = vlaneseq
    %v1469 = vshrl.u32 %v1468, 7
    %v1470 = vsub.s32 %v585, %v1469
    %v1471 = vrot.slane %v1312, %v1470
    %v1472 = vlaneseq
    %v1473 = vshrl.u32 %v1472, 7
    %v1474 = vsub.s32 %v590, %v1473
    %v1475 = vrot.slane %v1315, %v1474
    %v1476 = vsel %vm595, %v1475, %v1471
    %v1477 = vlaneseq
    %v1478 = vshrl.u32 %v1477, 7
    %v1479 = vsub.s32 %v585, %v1478
    %v1480 = vrot.slane %v1318, %v1479
    %v1481 = vlaneseq
    %v1482 = vshrl.u32 %v1481, 7
    %v1483 = vsub.s32 %v590, %v1482
    %v1484 = vrot.slane %v1321, %v1483
    %v1485 = vsel %vm595, %v1484, %v1480
    %v1486 = vlaneseq
    %v1487 = vshrl.u32 %v1486, 7
    %v1488 = vsub.s32 %v585, %v1487
    %v1489 = vrot.slane %v1324, %v1488
    %v1490 = vlaneseq
    %v1491 = vshrl.u32 %v1490, 7
    %v1492 = vsub.s32 %v590, %v1491
    %v1493 = vrot.slane %v1327, %v1492
    %v1494 = vsel %vm595, %v1493, %v1489
    %v1495 = vlaneseq
    %v1496 = vshrl.u32 %v1495, 7
    %v1497 = vsub.s32 %v585, %v1496
    %v1498 = vrot.slane %v1330, %v1497
    %v1499 = vlaneseq
    %v1500 = vshrl.u32 %v1499, 7
    %v1501 = vsub.s32 %v590, %v1500
    %v1502 = vrot.slane %v1333, %v1501
    %v1503 = vsel %vm595, %v1502, %v1498
    %v1504 = vlaneseq
    %v1505 = vshrl.u32 %v1504, 7
    %v1506 = vsub.s32 %v585, %v1505
    %v1507 = vrot.slane %v1336, %v1506
    %v1508 = vlaneseq
    %v1509 = vshrl.u32 %v1508, 7
    %v1510 = vsub.s32 %v590, %v1509
    %v1511 = vrot.slane %v1339, %v1510
    %v1512 = vsel %vm595, %v1511, %v1507
    %v1513 = vlaneseq
    %v1514 = vshrl.u32 %v1513, 7
    %v1515 = vsub.s32 %v585, %v1514
    %v1516 = vrot.slane %v1342, %v1515
    %v1517 = vlaneseq
    %v1518 = vshrl.u32 %v1517, 7
    %v1519 = vsub.s32 %v590, %v1518
    %v1520 = vrot.slane %v1345, %v1519
    %v1521 = vsel %vm595, %v1520, %v1516
    %v1522 = vsel %vm732, %v1395, %v1386
    %v1523 = vsel %vm734, %v1404, %v1522
    %v1524 = vsel %vm736, %v1413, %v1523
    %v1525 = vsel %vm738, %v1422, %v1524
    %v1526 = vsel %vm740, %v1431, %v1525
    %v1527 = vsel %vm742, %v1440, %v1526
    %v1528 = vsel %vm744, %v1449, %v1527
    %v1529 = vsel %vm732, %v1467, %v1458
    %v1530 = vsel %vm734, %v1476, %v1529
    %v1531 = vsel %vm736, %v1485, %v1530
    %v1532 = vsel %vm738, %v1494, %v1531
    %v1533 = vsel %vm740, %v1503, %v1532
    %v1534 = vsel %vm742, %v1512, %v1533
    %v1535 = vsel %vm744, %v1521, %v1534
    %v1538 = vsel %vm550, %v1528, -1e+09
    %v1539 = vsel %vm551, %v1535, -1e+09
    %v1540 = vsel %vm757, %v1538, -inf
    %1541 = vmax.xlane.f32.xlu0 %v1540
    %v1542 = vpop.xlane.xlu0 %1541
    %v1543 = vsel %vm757, %v1539, -inf
    %1544 = vmax.xlane.f32.xlu0 %v1543
    %v1545 = vpop.xlane.xlu0 %1544
    %v1546 = vsub.f32 %v1538, %v1542
    %v1547 = vsub.f32 %v1539, %v1545
    %v1548 = vmul.f32 %v1546, 1.442695
    %v1549 = vpow.pop %v1548
    %v1550 = vmul.f32 %v1547, 1.442695
    %v1551 = vpow.pop %v1550
    %v1552 = vmul.f32 %v1549, %v47
    %v1553 = vmul.f32 %v1551, %v48
    %v1554 = vsel %vm757, %v1552, 0.0
    %1555 = vadd.xlane.f32.xlu0 %v1554
    %v1556 = vpop.xlane.xlu0 %1555
    %v1557 = vsel %vm757, %v1553, 0.0
    %1558 = vadd.xlane.f32.xlu0 %v1557
    %v1559 = vpop.xlane.xlu0 %1558
    %vm1560 = vcmp.gt.f32.partialorder %v1556, 0.0
    %vm1561 = vcmp.gt.f32.partialorder %v1559, 0.0
    %v1562 = vsel %vm1560, %v1556, 1.0
    %v1563 = vsel %vm1561, %v1559, 1.0
    %v1564 = vrcp.pop %v1562
    %v1565 = vrcp.pop %v1563
    %v1566 = vmul.f32 %v1552, %v1564
    %v1567 = vmul.f32 %v1553, %v1565
    %v1568 = vpack.c.bf16 %v1567, %v1566
    %v1569 = vpack.c.bf16 %v903, %v900
    %v1570 = vlaneseq
    %v1571 = vshrl.u32 %v1570, 7
    %v1572 = vsub.s32 0, %v1571
    %v1573 = vrot.slane %v844, %v1572
    %v1575 = vsel %vm757, %v1568, 0
    %1577 = vmatprep.subr.bf16.mxu0 0
    %1578 = vmatpush1.bf16.msra.mxu0 0
    %1579 = vmatprep.subr.bf16.mxu0 0
    %1580 = vmatpush1.bf16.msra.mxu0 0
    %1581 = vmatprep.subr.bf16.mxu0 0
    %1582 = vmatpush1.bf16.msra.mxu0 0
    %1583 = vmatprep.subr.bf16.mxu0 0
    %1584 = vmatpush1.bf16.msra.mxu0 0
    %1585 = vmatprep.subr.bf16.mxu0 0
    %1586 = vmatpush1.bf16.msra.mxu0 0
    %1587 = vmatprep.subr.bf16.mxu0 0
    %1588 = vmatpush1.bf16.msra.mxu0 0
    %1589 = vmatprep.subr.bf16.mxu0 0
    %1590 = vmatpush1.bf16.msra.mxu0 0
    %1591 = vmatprep.subr.bf16.mxu0 0
    %1592 = vmatpush1.bf16.msra.mxu0 %v1569
    %1593 = vmatprep.subr.bf16.mxu0 0
    %1594 = vmatpush2.bf16.msra.mxu0 0
    %1595 = vmatprep.subr.bf16.mxu0 0
    %1596 = vmatpush2.bf16.msra.mxu0 0
    %1597 = vmatprep.subr.bf16.mxu0 0
    %1598 = vmatpush2.bf16.msra.mxu0 0
    %1599 = vmatprep.subr.bf16.mxu0 0
    %1600 = vmatpush2.bf16.msra.mxu0 0
    %1601 = vmatprep.subr.bf16.mxu0 0
    %1602 = vmatpush2.bf16.msra.mxu0 0
    %1603 = vmatprep.subr.bf16.mxu0 0
    %1604 = vmatpush2.bf16.msra.mxu0 0
    %1605 = vmatprep.subr.bf16.mxu0 0
    %1606 = vmatpush2.bf16.msra.mxu0 0
    %1607 = vmatprep.subr.bf16.mxu0 0
    %1608 = vmatpush2.bf16.msra.mxu0 0
    %1609 = vmatprep.mubr.bf16.mxu0 0
    %1610 = vmatmul.mubr.bf16.gmra.mxu0 %v1575
    %v1611 = vpop.f32.mrf.mxu0
    %v1612 = vadd.f32 %v1573, %v1611
    %v1613 = vpop.f32.mrf.mxu0
    %v1614 = vpop.f32.mrf.mxu0
    %v1615 = vadd.f32 %v1573, %v1614
    %v1616 = vpop.f32.mrf.mxu0
    %1617 = vdwg.mxu0
    %v1618 = vmax.f32 %v1612, 0.0
    %v1619 = vmax.f32 %v1615, 0.0
    %v1620 = vld [vmem:[#allocation2 + $0x18] sm:$0xf]
    %v1621 = vld [vmem:[#allocation2 + $0x1c] sm:$0xf]
    %v1622 = vld [vmem:[#allocation2 + $0x20] sm:$0xf]
    %v1623 = vld [vmem:[#allocation2 + $0x24] sm:$0xf]
    %v1624 = vld [vmem:[#allocation5 + $0x6] sm:$0x1]
    %v1625 = vld [vmem:[#allocation5 + $0x7] sm:$0x1]
    %v1626 = vld [vmem:[#allocation5 + $0x8] sm:$0x1]
    %v1627 = vpack.c.bf16 %v1619, %v1618
    %v1628 = vlaneseq
    %v1629 = vshrl.u32 %v1628, 7
    %v1630 = vsub.s32 0, %v1629
    %v1631 = vrot.slane %v1624, %v1630
    %v1636 = vunpack.c.l.b16 %v1620
    %v1637 = vunpack.c.l.b16 %v1621
    %v1638 = vunpack.c.l.b16 %v1622
    %v1639 = vunpack.c.l.b16 %v1623
    %v1640 = vpack.c.b16 %v1637, %v1636
    %v1641 = vpack.c.b16 %v1639, %v1638
    %v1645 = vsel %vm453, %v1627, 0
    %1647 = vmatprep.subr.bf16.mxu0 0
    %1648 = vmatpush1.bf16.msra.mxu0 0
    %1649 = vmatprep.subr.bf16.mxu0 0
    %1650 = vmatpush1.bf16.msra.mxu0 0
    %1651 = vmatprep.subr.bf16.mxu0 0
    %1652 = vmatpush1.bf16.msra.mxu0 0
    %1653 = vmatprep.subr.bf16.mxu0 0
    %1654 = vmatpush1.bf16.msra.mxu0 0
    %1655 = vmatprep.subr.bf16.mxu0 0
    %1656 = vmatpush1.bf16.msra.mxu0 0
    %1657 = vmatprep.subr.bf16.mxu0 0
    %1658 = vmatpush1.bf16.msra.mxu0 0
    %1659 = vmatprep.subr.bf16.mxu0 0
    %1660 = vmatpush1.bf16.msra.mxu0 %v1641
    %1661 = vmatprep.subr.bf16.mxu0 0
    %1662 = vmatpush1.bf16.msra.mxu0 %v1640
    %1663 = vmatprep.subr.bf16.mxu0 0
    %1664 = vmatpush2.bf16.msra.mxu0 0
    %1665 = vmatprep.subr.bf16.mxu0 0
    %1666 = vmatpush2.bf16.msra.mxu0 0
    %1667 = vmatprep.subr.bf16.mxu0 0
    %1668 = vmatpush2.bf16.msra.mxu0 0
    %1669 = vmatprep.subr.bf16.mxu0 0
    %1670 = vmatpush2.bf16.msra.mxu0 0
    %1671 = vmatprep.subr.bf16.mxu0 0
    %1672 = vmatpush2.bf16.msra.mxu0 0
    %1673 = vmatprep.subr.bf16.mxu0 0
    %1674 = vmatpush2.bf16.msra.mxu0 0
    %1675 = vmatprep.subr.bf16.mxu0 0
    %1676 = vmatpush2.bf16.msra.mxu0 0
    %1677 = vmatprep.subr.bf16.mxu0 0
    %1678 = vmatpush2.bf16.msra.mxu0 0
    %1679 = vmatprep.mubr.bf16.mxu0 0
    %1680 = vmatmul.mubr.bf16.gmra.mxu0 %v1645
    %v1681 = vpop.f32.mrf.mxu0
    %v1682 = vadd.f32 %v1631, %v1681
    %v1683 = vpop.f32.mrf.mxu0
    %v1684 = vpop.f32.mrf.mxu0
    %v1685 = vadd.f32 %v1631, %v1684
    %v1686 = vpop.f32.mrf.mxu0
    %1687 = vdwg.mxu0
    %v1690 = vcombine.high %v1682, %v1682
    %v1692 = vunpack.c.l.s4 1966171168
    %v1693 = vunpack.c.0.s8 %v1692
    %v1694 = vlaneseq
    %v1695 = vshrl.u32 %v1694, 7
    %v1696 = vsub.s32 %v1693, %v1695
    %v1697 = vrot.slane %v1682, %v1696
    %v1699 = vunpack.c.l.s4 1966171168
    %v1700 = vunpack.c.0.s8 %v1699
    %v1701 = vlaneseq
    %v1702 = vshrl.u32 %v1701, 7
    %v1703 = vsub.s32 %v1700, %v1702
    %v1704 = vrot.slane %v1690, %v1703
    %v1705 = vcombine.high %v1697, %v1697
    %v1706 = vcombine.high %v1704, %v1704
    %v1708 = vunpack.c.l.s4 1966171168
    %v1709 = vunpack.c.0.s8 %v1708
    %v1710 = vlaneseq
    %v1711 = vshrl.u32 %v1710, 7
    %v1712 = vsub.s32 %v1709, %v1711
    %v1713 = vrot.slane %v1697, %v1712
    %v1715 = vunpack.c.l.s4 1966171168
    %v1716 = vunpack.c.0.s8 %v1715
    %v1717 = vlaneseq
    %v1718 = vshrl.u32 %v1717, 7
    %v1719 = vsub.s32 %v1716, %v1718
    %v1720 = vrot.slane %v1704, %v1719
    %v1722 = vunpack.c.l.s4 1966171168
    %v1723 = vunpack.c.0.s8 %v1722
    %v1724 = vlaneseq
    %v1725 = vshrl.u32 %v1724, 7
    %v1726 = vsub.s32 %v1723, %v1725
    %v1727 = vrot.slane %v1705, %v1726
    %v1729 = vunpack.c.l.s4 1966171168
    %v1730 = vunpack.c.0.s8 %v1729
    %v1731 = vlaneseq
    %v1732 = vshrl.u32 %v1731, 7
    %v1733 = vsub.s32 %v1730, %v1732
    %v1734 = vrot.slane %v1706, %v1733
    %v1735 = vcombine.high %v1713, %v1713
    %v1736 = vcombine.high %v1720, %v1720
    %v1737 = vcombine.high %v1727, %v1727
    %v1738 = vcombine.high %v1734, %v1734
    %v1739 = vcombine.high %v1685, %v1685
    %v1741 = vunpack.c.l.s4 1966171168
    %v1742 = vunpack.c.0.s8 %v1741
    %v1743 = vlaneseq
    %v1744 = vshrl.u32 %v1743, 7
    %v1745 = vsub.s32 %v1742, %v1744
    %v1746 = vrot.slane %v1685, %v1745
    %v1748 = vunpack.c.l.s4 1966171168
    %v1749 = vunpack.c.0.s8 %v1748
    %v1750 = vlaneseq
    %v1751 = vshrl.u32 %v1750, 7
    %v1752 = vsub.s32 %v1749, %v1751
    %v1753 = vrot.slane %v1739, %v1752
    %v1754 = vcombine.high %v1746, %v1746
    %v1755 = vcombine.high %v1753, %v1753
    %v1757 = vunpack.c.l.s4 1966171168
    %v1758 = vunpack.c.0.s8 %v1757
    %v1759 = vlaneseq
    %v1760 = vshrl.u32 %v1759, 7
    %v1761 = vsub.s32 %v1758, %v1760
    %v1762 = vrot.slane %v1746, %v1761
    %v1764 = vunpack.c.l.s4 1966171168
    %v1765 = vunpack.c.0.s8 %v1764
    %v1766 = vlaneseq
    %v1767 = vshrl.u32 %v1766, 7
    %v1768 = vsub.s32 %v1765, %v1767
    %v1769 = vrot.slane %v1753, %v1768
    %v1771 = vunpack.c.l.s4 1966171168
    %v1772 = vunpack.c.0.s8 %v1771
    %v1773 = vlaneseq
    %v1774 = vshrl.u32 %v1773, 7
    %v1775 = vsub.s32 %v1772, %v1774
    %v1776 = vrot.slane %v1754, %v1775
    %v1778 = vunpack.c.l.s4 1966171168
    %v1779 = vunpack.c.0.s8 %v1778
    %v1780 = vlaneseq
    %v1781 = vshrl.u32 %v1780, 7
    %v1782 = vsub.s32 %v1779, %v1781
    %v1783 = vrot.slane %v1755, %v1782
    %v1784 = vcombine.high %v1762, %v1762
    %v1785 = vcombine.high %v1769, %v1769
    %v1786 = vcombine.high %v1776, %v1776
    %v1787 = vcombine.high %v1783, %v1783
    %v1788 = vlaneseq
    %v1789 = vshrl.u32 %v1788, 7
    %v1790 = vsub.s32 0, %v1789
    %v1791 = vrot.slane %v1713, %v1790
    %v1792 = vlaneseq
    %v1793 = vshrl.u32 %v1792, 7
    %v1794 = vsub.s32 0, %v1793
    %v1795 = vrot.slane %v1727, %v1794
    %v1796 = vlaneseq
    %v1797 = vshrl.u32 %v1796, 7
    %v1798 = vsub.s32 0, %v1797
    %v1799 = vrot.slane %v1735, %v1798
    %v1800 = vlaneseq
    %v1801 = vshrl.u32 %v1800, 7
    %v1802 = vsub.s32 0, %v1801
    %v1803 = vrot.slane %v1737, %v1802
    %v1804 = vlaneseq
    %v1805 = vshrl.u32 %v1804, 7
    %v1806 = vsub.s32 0, %v1805
    %v1807 = vrot.slane %v1720, %v1806
    %v1808 = vlaneseq
    %v1809 = vshrl.u32 %v1808, 7
    %v1810 = vsub.s32 0, %v1809
    %v1811 = vrot.slane %v1734, %v1810
    %v1812 = vlaneseq
    %v1813 = vshrl.u32 %v1812, 7
    %v1814 = vsub.s32 0, %v1813
    %v1815 = vrot.slane %v1736, %v1814
    %v1816 = vlaneseq
    %v1817 = vshrl.u32 %v1816, 7
    %v1818 = vsub.s32 0, %v1817
    %v1819 = vrot.slane %v1738, %v1818
    %v1820 = vlaneseq
    %v1821 = vshrl.u32 %v1820, 7
    %v1822 = vsub.s32 0, %v1821
    %v1823 = vrot.slane %v1762, %v1822
    %v1824 = vlaneseq
    %v1825 = vshrl.u32 %v1824, 7
    %v1826 = vsub.s32 0, %v1825
    %v1827 = vrot.slane %v1776, %v1826
    %v1828 = vlaneseq
    %v1829 = vshrl.u32 %v1828, 7
    %v1830 = vsub.s32 0, %v1829
    %v1831 = vrot.slane %v1784, %v1830
    %v1832 = vlaneseq
    %v1833 = vshrl.u32 %v1832, 7
    %v1834 = vsub.s32 0, %v1833
    %v1835 = vrot.slane %v1786, %v1834
    %v1836 = vlaneseq
    %v1837 = vshrl.u32 %v1836, 7
    %v1838 = vsub.s32 0, %v1837
    %v1839 = vrot.slane %v1769, %v1838
    %v1840 = vlaneseq
    %v1841 = vshrl.u32 %v1840, 7
    %v1842 = vsub.s32 0, %v1841
    %v1843 = vrot.slane %v1783, %v1842
    %v1844 = vlaneseq
    %v1845 = vshrl.u32 %v1844, 7
    %v1846 = vsub.s32 0, %v1845
    %v1847 = vrot.slane %v1785, %v1846
    %v1848 = vlaneseq
    %v1849 = vshrl.u32 %v1848, 7
    %v1850 = vsub.s32 0, %v1849
    %v1851 = vrot.slane %v1787, %v1850
    %1852 = vrot.lane.b32.xlu0 %v1791, 96
    %v1853 = vpop.permute.xlu0 %1852
    %1854 = vrot.lane.b32.xlu0 %v1795, 96
    %v1855 = vpop.permute.xlu0 %1854
    %1856 = vrot.lane.b32.xlu0 %v1799, 96
    %v1857 = vpop.permute.xlu0 %1856
    %1858 = vrot.lane.b32.xlu0 %v1803, 96
    %v1859 = vpop.permute.xlu0 %1858
    %1860 = vrot.lane.b32.xlu0 %v1807, 96
    %v1861 = vpop.permute.xlu0 %1860
    %1862 = vrot.lane.b32.xlu0 %v1811, 96
    %v1863 = vpop.permute.xlu0 %1862
    %1864 = vrot.lane.b32.xlu0 %v1815, 96
    %v1865 = vpop.permute.xlu0 %1864
    %1866 = vrot.lane.b32.xlu0 %v1819, 96
    %v1867 = vpop.permute.xlu0 %1866
    %1868 = vrot.lane.b32.xlu0 %v1823, 96
    %v1869 = vpop.permute.xlu0 %1868
    %1870 = vrot.lane.b32.xlu0 %v1827, 96
    %v1871 = vpop.permute.xlu0 %1870
    %1872 = vrot.lane.b32.xlu0 %v1831, 96
    %v1873 = vpop.permute.xlu0 %1872
    %1874 = vrot.lane.b32.xlu0 %v1835, 96
    %v1875 = vpop.permute.xlu0 %1874
    %1876 = vrot.lane.b32.xlu0 %v1839, 96
    %v1877 = vpop.permute.xlu0 %1876
    %1878 = vrot.lane.b32.xlu0 %v1843, 96
    %v1879 = vpop.permute.xlu0 %1878
    %1880 = vrot.lane.b32.xlu0 %v1847, 96
    %v1881 = vpop.permute.xlu0 %1880
    %1882 = vrot.lane.b32.xlu0 %v1851, 96
    %v1883 = vpop.permute.xlu0 %1882
    %v1900 = vadd.f32 %v1682, %v1853
    %v1901 = vadd.f32 %v1685, %v1853
    %v1902 = vadd.f32 %v1682, %v1855
    %v1903 = vadd.f32 %v1685, %v1855
    %v1904 = vadd.f32 %v1682, %v1857
    %v1905 = vadd.f32 %v1685, %v1857
    %v1906 = vadd.f32 %v1682, %v1859
    %v1907 = vadd.f32 %v1685, %v1859
    %v1908 = vadd.f32 %v1682, %v1861
    %v1909 = vadd.f32 %v1685, %v1861
    %v1910 = vadd.f32 %v1682, %v1863
    %v1911 = vadd.f32 %v1685, %v1863
    %v1912 = vadd.f32 %v1682, %v1865
    %v1913 = vadd.f32 %v1685, %v1865
    %v1914 = vadd.f32 %v1682, %v1867
    %v1915 = vadd.f32 %v1685, %v1867
    %v1916 = vadd.f32 %v1682, %v1869
    %v1917 = vadd.f32 %v1685, %v1869
    %v1918 = vadd.f32 %v1682, %v1871
    %v1919 = vadd.f32 %v1685, %v1871
    %v1920 = vadd.f32 %v1682, %v1873
    %v1921 = vadd.f32 %v1685, %v1873
    %v1922 = vadd.f32 %v1682, %v1875
    %v1923 = vadd.f32 %v1685, %v1875
    %v1924 = vadd.f32 %v1682, %v1877
    %v1925 = vadd.f32 %v1685, %v1877
    %v1926 = vadd.f32 %v1682, %v1879
    %v1927 = vadd.f32 %v1685, %v1879
    %v1928 = vadd.f32 %v1682, %v1881
    %v1929 = vadd.f32 %v1685, %v1881
    %v1930 = vadd.f32 %v1682, %v1883
    %v1931 = vadd.f32 %v1685, %v1883
    %v1932 = vmul.f32 %v1900, 0.2
    %v1933 = vmul.f32 %v1901, 0.2
    %v1934 = vmul.f32 %v1902, 0.2
    %v1935 = vmul.f32 %v1903, 0.2
    %v1936 = vmul.f32 %v1904, 0.2
    %v1937 = vmul.f32 %v1905, 0.2
    %v1938 = vmul.f32 %v1906, 0.2
    %v1939 = vmul.f32 %v1907, 0.2
    %v1940 = vmul.f32 %v1908, 0.2
    %v1941 = vmul.f32 %v1909, 0.2
    %v1942 = vmul.f32 %v1910, 0.2
    %v1943 = vmul.f32 %v1911, 0.2
    %v1944 = vmul.f32 %v1912, 0.2
    %v1945 = vmul.f32 %v1913, 0.2
    %v1946 = vmul.f32 %v1914, 0.2
    %v1947 = vmul.f32 %v1915, 0.2
    %v1948 = vmul.f32 %v1916, 0.2
    %v1949 = vmul.f32 %v1917, 0.2
    %v1950 = vmul.f32 %v1918, 0.2
    %v1951 = vmul.f32 %v1919, 0.2
    %v1952 = vmul.f32 %v1920, 0.2
    %v1953 = vmul.f32 %v1921, 0.2
    %v1954 = vmul.f32 %v1922, 0.2
    %v1955 = vmul.f32 %v1923, 0.2
    %v1956 = vmul.f32 %v1924, 0.2
    %v1957 = vmul.f32 %v1925, 0.2
    %v1958 = vmul.f32 %v1926, 0.2
    %v1959 = vmul.f32 %v1927, 0.2
    %v1960 = vmul.f32 %v1928, 0.2
    %v1961 = vmul.f32 %v1929, 0.2
    %v1962 = vmul.f32 %v1930, 0.2
    %v1963 = vmul.f32 %v1931, 0.2
    %v1964 = vmax.f32 %v1900, %v1932
    %v1965 = vmax.f32 %v1901, %v1933
    %v1966 = vmax.f32 %v1902, %v1934
    %v1967 = vmax.f32 %v1903, %v1935
    %v1968 = vmax.f32 %v1904, %v1936
    %v1969 = vmax.f32 %v1905, %v1937
    %v1970 = vmax.f32 %v1906, %v1938
    %v1971 = vmax.f32 %v1907, %v1939
    %v1972 = vmax.f32 %v1908, %v1940
    %v1973 = vmax.f32 %v1909, %v1941
    %v1974 = vmax.f32 %v1910, %v1942
    %v1975 = vmax.f32 %v1911, %v1943
    %v1976 = vmax.f32 %v1912, %v1944
    %v1977 = vmax.f32 %v1913, %v1945
    %v1978 = vmax.f32 %v1914, %v1946
    %v1979 = vmax.f32 %v1915, %v1947
    %v1980 = vmax.f32 %v1916, %v1948
    %v1981 = vmax.f32 %v1917, %v1949
    %v1982 = vmax.f32 %v1918, %v1950
    %v1983 = vmax.f32 %v1919, %v1951
    %v1984 = vmax.f32 %v1920, %v1952
    %v1985 = vmax.f32 %v1921, %v1953
    %v1986 = vmax.f32 %v1922, %v1954
    %v1987 = vmax.f32 %v1923, %v1955
    %v1988 = vmax.f32 %v1924, %v1956
    %v1989 = vmax.f32 %v1925, %v1957
    %v1990 = vmax.f32 %v1926, %v1958
    %v1991 = vmax.f32 %v1927, %v1959
    %v1992 = vmax.f32 %v1928, %v1960
    %v1993 = vmax.f32 %v1929, %v1961
    %v1994 = vmax.f32 %v1930, %v1962
    %v1995 = vmax.f32 %v1931, %v1963
    %v1996 = vlaneseq
    %v1997 = vshrl.u32 %v1996, 7
    %v1998 = vsub.s32 0, %v1997
    %v1999 = vrot.slane %v1625, %v1998
    %v2000 = vmul.f32 %v1964, %v1999
    %v2001 = vmul.f32 %v1965, %v1999
    %v2002 = vmul.f32 %v1966, %v1999
    %v2003 = vmul.f32 %v1967, %v1999
    %v2004 = vmul.f32 %v1968, %v1999
    %v2005 = vmul.f32 %v1969, %v1999
    %v2006 = vmul.f32 %v1970, %v1999
    %v2007 = vmul.f32 %v1971, %v1999
    %v2008 = vmul.f32 %v1972, %v1999
    %v2009 = vmul.f32 %v1973, %v1999
    %v2010 = vmul.f32 %v1974, %v1999
    %v2011 = vmul.f32 %v1975, %v1999
    %v2012 = vmul.f32 %v1976, %v1999
    %v2013 = vmul.f32 %v1977, %v1999
    %v2014 = vmul.f32 %v1978, %v1999
    %v2015 = vmul.f32 %v1979, %v1999
    %v2016 = vmul.f32 %v1980, %v1999
    %v2017 = vmul.f32 %v1981, %v1999
    %v2018 = vmul.f32 %v1982, %v1999
    %v2019 = vmul.f32 %v1983, %v1999
    %v2020 = vmul.f32 %v1984, %v1999
    %v2021 = vmul.f32 %v1985, %v1999
    %v2022 = vmul.f32 %v1986, %v1999
    %v2023 = vmul.f32 %v1987, %v1999
    %v2024 = vmul.f32 %v1988, %v1999
    %v2025 = vmul.f32 %v1989, %v1999
    %v2026 = vmul.f32 %v1990, %v1999
    %v2027 = vmul.f32 %v1991, %v1999
    %v2028 = vmul.f32 %v1992, %v1999
    %v2029 = vmul.f32 %v1993, %v1999
    %v2030 = vmul.f32 %v1994, %v1999
    %v2031 = vmul.f32 %v1995, %v1999
    %v2032 = vsel %vm453, %v2000, 0.0
    %2033 = vadd.xlane.f32.xlu0 %v2032
    %v2034 = vpop.xlane.xlu0 %2033
    %v2035 = vsel %vm453, %v2001, 0.0
    %2036 = vadd.xlane.f32.xlu0 %v2035
    %v2037 = vpop.xlane.xlu0 %2036
    %v2038 = vsel %vm453, %v2002, 0.0
    %2039 = vadd.xlane.f32.xlu0 %v2038
    %v2040 = vpop.xlane.xlu0 %2039
    %v2041 = vsel %vm453, %v2003, 0.0
    %2042 = vadd.xlane.f32.xlu0 %v2041
    %v2043 = vpop.xlane.xlu0 %2042
    %v2044 = vsel %vm453, %v2004, 0.0
    %2045 = vadd.xlane.f32.xlu0 %v2044
    %v2046 = vpop.xlane.xlu0 %2045
    %v2047 = vsel %vm453, %v2005, 0.0
    %2048 = vadd.xlane.f32.xlu0 %v2047
    %v2049 = vpop.xlane.xlu0 %2048
    %v2050 = vsel %vm453, %v2006, 0.0
    %2051 = vadd.xlane.f32.xlu0 %v2050
    %v2052 = vpop.xlane.xlu0 %2051
    %v2053 = vsel %vm453, %v2007, 0.0
    %2054 = vadd.xlane.f32.xlu0 %v2053
    %v2055 = vpop.xlane.xlu0 %2054
    %v2056 = vsel %vm453, %v2008, 0.0
    %2057 = vadd.xlane.f32.xlu0 %v2056
    %v2058 = vpop.xlane.xlu0 %2057
    %v2059 = vsel %vm453, %v2009, 0.0
    %2060 = vadd.xlane.f32.xlu0 %v2059
    %v2061 = vpop.xlane.xlu0 %2060
    %v2062 = vsel %vm453, %v2010, 0.0
    %2063 = vadd.xlane.f32.xlu0 %v2062
    %v2064 = vpop.xlane.xlu0 %2063
    %v2065 = vsel %vm453, %v2011, 0.0
    %2066 = vadd.xlane.f32.xlu0 %v2065
    %v2067 = vpop.xlane.xlu0 %2066
    %v2068 = vsel %vm453, %v2012, 0.0
    %2069 = vadd.xlane.f32.xlu0 %v2068
    %v2070 = vpop.xlane.xlu0 %2069
    %v2071 = vsel %vm453, %v2013, 0.0
    %2072 = vadd.xlane.f32.xlu0 %v2071
    %v2073 = vpop.xlane.xlu0 %2072
    %v2074 = vsel %vm453, %v2014, 0.0
    %2075 = vadd.xlane.f32.xlu0 %v2074
    %v2076 = vpop.xlane.xlu0 %2075
    %v2077 = vsel %vm453, %v2015, 0.0
    %2078 = vadd.xlane.f32.xlu0 %v2077
    %v2079 = vpop.xlane.xlu0 %2078
    %v2080 = vsel %vm453, %v2016, 0.0
    %2081 = vadd.xlane.f32.xlu0 %v2080
    %v2082 = vpop.xlane.xlu0 %2081
    %v2083 = vsel %vm453, %v2017, 0.0
    %2084 = vadd.xlane.f32.xlu0 %v2083
    %v2085 = vpop.xlane.xlu0 %2084
    %v2086 = vsel %vm453, %v2018, 0.0
    %2087 = vadd.xlane.f32.xlu0 %v2086
    %v2088 = vpop.xlane.xlu0 %2087
    %v2089 = vsel %vm453, %v2019, 0.0
    %2090 = vadd.xlane.f32.xlu0 %v2089
    %v2091 = vpop.xlane.xlu0 %2090
    %v2092 = vsel %vm453, %v2020, 0.0
    %2093 = vadd.xlane.f32.xlu0 %v2092
    %v2094 = vpop.xlane.xlu0 %2093
    %v2095 = vsel %vm453, %v2021, 0.0
    %2096 = vadd.xlane.f32.xlu0 %v2095
    %v2097 = vpop.xlane.xlu0 %2096
    %v2098 = vsel %vm453, %v2022, 0.0
    %2099 = vadd.xlane.f32.xlu0 %v2098
    %v2100 = vpop.xlane.xlu0 %2099
    %v2101 = vsel %vm453, %v2023, 0.0
    %2102 = vadd.xlane.f32.xlu0 %v2101
    %v2103 = vpop.xlane.xlu0 %2102
    %v2104 = vsel %vm453, %v2024, 0.0
    %2105 = vadd.xlane.f32.xlu0 %v2104
    %v2106 = vpop.xlane.xlu0 %2105
    %v2107 = vsel %vm453, %v2025, 0.0
    %2108 = vadd.xlane.f32.xlu0 %v2107
    %v2109 = vpop.xlane.xlu0 %2108
    %v2110 = vsel %vm453, %v2026, 0.0
    %2111 = vadd.xlane.f32.xlu0 %v2110
    %v2112 = vpop.xlane.xlu0 %2111
    %v2113 = vsel %vm453, %v2027, 0.0
    %2114 = vadd.xlane.f32.xlu0 %v2113
    %v2115 = vpop.xlane.xlu0 %2114
    %v2116 = vsel %vm453, %v2028, 0.0
    %2117 = vadd.xlane.f32.xlu0 %v2116
    %v2118 = vpop.xlane.xlu0 %2117
    %v2119 = vsel %vm453, %v2029, 0.0
    %2120 = vadd.xlane.f32.xlu0 %v2119
    %v2121 = vpop.xlane.xlu0 %2120
    %v2122 = vsel %vm453, %v2030, 0.0
    %2123 = vadd.xlane.f32.xlu0 %v2122
    %v2124 = vpop.xlane.xlu0 %2123
    %v2125 = vsel %vm453, %v2031, 0.0
    %2126 = vadd.xlane.f32.xlu0 %v2125
    %v2127 = vpop.xlane.xlu0 %2126
    %v2160 = vlaneseq
    %v2161 = vshrl.u32 %v2160, 7
    %v2162 = vsub.s32 %v585, %v2161
    %v2163 = vrot.slane %v2034, %v2162
    %v2164 = vlaneseq
    %v2165 = vshrl.u32 %v2164, 7
    %v2166 = vsub.s32 %v590, %v2165
    %v2167 = vrot.slane %v2037, %v2166
    %v2168 = vsel %vm595, %v2167, %v2163
    %v2169 = vlaneseq
    %v2170 = vshrl.u32 %v2169, 7
    %v2171 = vsub.s32 %v585, %v2170
    %v2172 = vrot.slane %v2040, %v2171
    %v2173 = vlaneseq
    %v2174 = vshrl.u32 %v2173, 7
    %v2175 = vsub.s32 %v590, %v2174
    %v2176 = vrot.slane %v2043, %v2175
    %v2177 = vsel %vm595, %v2176, %v2172
    %v2178 = vlaneseq
    %v2179 = vshrl.u32 %v2178, 7
    %v2180 = vsub.s32 %v585, %v2179
    %v2181 = vrot.slane %v2046, %v2180
    %v2182 = vlaneseq
    %v2183 = vshrl.u32 %v2182, 7
    %v2184 = vsub.s32 %v590, %v2183
    %v2185 = vrot.slane %v2049, %v2184
    %v2186 = vsel %vm595, %v2185, %v2181
    %v2187 = vlaneseq
    %v2188 = vshrl.u32 %v2187, 7
    %v2189 = vsub.s32 %v585, %v2188
    %v2190 = vrot.slane %v2052, %v2189
    %v2191 = vlaneseq
    %v2192 = vshrl.u32 %v2191, 7
    %v2193 = vsub.s32 %v590, %v2192
    %v2194 = vrot.slane %v2055, %v2193
    %v2195 = vsel %vm595, %v2194, %v2190
    %v2196 = vlaneseq
    %v2197 = vshrl.u32 %v2196, 7
    %v2198 = vsub.s32 %v585, %v2197
    %v2199 = vrot.slane %v2058, %v2198
    %v2200 = vlaneseq
    %v2201 = vshrl.u32 %v2200, 7
    %v2202 = vsub.s32 %v590, %v2201
    %v2203 = vrot.slane %v2061, %v2202
    %v2204 = vsel %vm595, %v2203, %v2199
    %v2205 = vlaneseq
    %v2206 = vshrl.u32 %v2205, 7
    %v2207 = vsub.s32 %v585, %v2206
    %v2208 = vrot.slane %v2064, %v2207
    %v2209 = vlaneseq
    %v2210 = vshrl.u32 %v2209, 7
    %v2211 = vsub.s32 %v590, %v2210
    %v2212 = vrot.slane %v2067, %v2211
    %v2213 = vsel %vm595, %v2212, %v2208
    %v2214 = vlaneseq
    %v2215 = vshrl.u32 %v2214, 7
    %v2216 = vsub.s32 %v585, %v2215
    %v2217 = vrot.slane %v2070, %v2216
    %v2218 = vlaneseq
    %v2219 = vshrl.u32 %v2218, 7
    %v2220 = vsub.s32 %v590, %v2219
    %v2221 = vrot.slane %v2073, %v2220
    %v2222 = vsel %vm595, %v2221, %v2217
    %v2223 = vlaneseq
    %v2224 = vshrl.u32 %v2223, 7
    %v2225 = vsub.s32 %v585, %v2224
    %v2226 = vrot.slane %v2076, %v2225
    %v2227 = vlaneseq
    %v2228 = vshrl.u32 %v2227, 7
    %v2229 = vsub.s32 %v590, %v2228
    %v2230 = vrot.slane %v2079, %v2229
    %v2231 = vsel %vm595, %v2230, %v2226
    %v2232 = vlaneseq
    %v2233 = vshrl.u32 %v2232, 7
    %v2234 = vsub.s32 %v585, %v2233
    %v2235 = vrot.slane %v2082, %v2234
    %v2236 = vlaneseq
    %v2237 = vshrl.u32 %v2236, 7
    %v2238 = vsub.s32 %v590, %v2237
    %v2239 = vrot.slane %v2085, %v2238
    %v2240 = vsel %vm595, %v2239, %v2235
    %v2241 = vlaneseq
    %v2242 = vshrl.u32 %v2241, 7
    %v2243 = vsub.s32 %v585, %v2242
    %v2244 = vrot.slane %v2088, %v2243
    %v2245 = vlaneseq
    %v2246 = vshrl.u32 %v2245, 7
    %v2247 = vsub.s32 %v590, %v2246
    %v2248 = vrot.slane %v2091, %v2247
    %v2249 = vsel %vm595, %v2248, %v2244
    %v2250 = vlaneseq
    %v2251 = vshrl.u32 %v2250, 7
    %v2252 = vsub.s32 %v585, %v2251
    %v2253 = vrot.slane %v2094, %v2252
    %v2254 = vlaneseq
    %v2255 = vshrl.u32 %v2254, 7
    %v2256 = vsub.s32 %v590, %v2255
    %v2257 = vrot.slane %v2097, %v2256
    %v2258 = vsel %vm595, %v2257, %v2253
    %v2259 = vlaneseq
    %v2260 = vshrl.u32 %v2259, 7
    %v2261 = vsub.s32 %v585, %v2260
    %v2262 = vrot.slane %v2100, %v2261
    %v2263 = vlaneseq
    %v2264 = vshrl.u32 %v2263, 7
    %v2265 = vsub.s32 %v590, %v2264
    %v2266 = vrot.slane %v2103, %v2265
    %v2267 = vsel %vm595, %v2266, %v2262
    %v2268 = vlaneseq
    %v2269 = vshrl.u32 %v2268, 7
    %v2270 = vsub.s32 %v585, %v2269
    %v2271 = vrot.slane %v2106, %v2270
    %v2272 = vlaneseq
    %v2273 = vshrl.u32 %v2272, 7
    %v2274 = vsub.s32 %v590, %v2273
    %v2275 = vrot.slane %v2109, %v2274
    %v2276 = vsel %vm595, %v2275, %v2271
    %v2277 = vlaneseq
    %v2278 = vshrl.u32 %v2277, 7
    %v2279 = vsub.s32 %v585, %v2278
    %v2280 = vrot.slane %v2112, %v2279
    %v2281 = vlaneseq
    %v2282 = vshrl.u32 %v2281, 7
    %v2283 = vsub.s32 %v590, %v2282
    %v2284 = vrot.slane %v2115, %v2283
    %v2285 = vsel %vm595, %v2284, %v2280
    %v2286 = vlaneseq
    %v2287 = vshrl.u32 %v2286, 7
    %v2288 = vsub.s32 %v585, %v2287
    %v2289 = vrot.slane %v2118, %v2288
    %v2290 = vlaneseq
    %v2291 = vshrl.u32 %v2290, 7
    %v2292 = vsub.s32 %v590, %v2291
    %v2293 = vrot.slane %v2121, %v2292
    %v2294 = vsel %vm595, %v2293, %v2289
    %v2295 = vlaneseq
    %v2296 = vshrl.u32 %v2295, 7
    %v2297 = vsub.s32 %v585, %v2296
    %v2298 = vrot.slane %v2124, %v2297
    %v2299 = vlaneseq
    %v2300 = vshrl.u32 %v2299, 7
    %v2301 = vsub.s32 %v590, %v2300
    %v2302 = vrot.slane %v2127, %v2301
    %v2303 = vsel %vm595, %v2302, %v2298
    %v2304 = vsel %vm732, %v2177, %v2168
    %v2305 = vsel %vm734, %v2186, %v2304
    %v2306 = vsel %vm736, %v2195, %v2305
    %v2307 = vsel %vm738, %v2204, %v2306
    %v2308 = vsel %vm740, %v2213, %v2307
    %v2309 = vsel %vm742, %v2222, %v2308
    %v2310 = vsel %vm744, %v2231, %v2309
    %v2311 = vsel %vm732, %v2249, %v2240
    %v2312 = vsel %vm734, %v2258, %v2311
    %v2313 = vsel %vm736, %v2267, %v2312
    %v2314 = vsel %vm738, %v2276, %v2313
    %v2315 = vsel %vm740, %v2285, %v2314
    %v2316 = vsel %vm742, %v2294, %v2315
    %v2317 = vsel %vm744, %v2303, %v2316
    %v2320 = vsel %vm550, %v2310, -1e+09
    %v2321 = vsel %vm551, %v2317, -1e+09
    %v2322 = vsel %vm757, %v2320, -inf
    %2323 = vmax.xlane.f32.xlu0 %v2322
    %v2324 = vpop.xlane.xlu0 %2323
    %v2325 = vsel %vm757, %v2321, -inf
    %2326 = vmax.xlane.f32.xlu0 %v2325
    %v2327 = vpop.xlane.xlu0 %2326
    %v2328 = vsub.f32 %v2320, %v2324
    %v2329 = vsub.f32 %v2321, %v2327
    %v2330 = vmul.f32 %v2328, 1.442695
    %v2331 = vpow.pop %v2330
    %v2332 = vmul.f32 %v2329, 1.442695
    %v2333 = vpow.pop %v2332
    %v2334 = vmul.f32 %v2331, %v47
    %v2335 = vmul.f32 %v2333, %v48
    %v2336 = vsel %vm757, %v2334, 0.0
    %2337 = vadd.xlane.f32.xlu0 %v2336
    %v2338 = vpop.xlane.xlu0 %2337
    %v2339 = vsel %vm757, %v2335, 0.0
    %2340 = vadd.xlane.f32.xlu0 %v2339
    %v2341 = vpop.xlane.xlu0 %2340
    %vm2342 = vcmp.gt.f32.partialorder %v2338, 0.0
    %vm2343 = vcmp.gt.f32.partialorder %v2341, 0.0
    %v2344 = vsel %vm2342, %v2338, 1.0
    %v2345 = vsel %vm2343, %v2341, 1.0
    %v2346 = vrcp.pop %v2344
    %v2347 = vrcp.pop %v2345
    %v2348 = vmul.f32 %v2334, %v2346
    %v2349 = vmul.f32 %v2335, %v2347
    %v2350 = vpack.c.bf16 %v2349, %v2348
    %v2351 = vpack.c.bf16 %v1685, %v1682
    %v2352 = vlaneseq
    %v2353 = vshrl.u32 %v2352, 7
    %v2354 = vsub.s32 0, %v2353
    %v2355 = vrot.slane %v1626, %v2354
    %v2357 = vsel %vm757, %v2350, 0
    %2359 = vmatprep.subr.bf16.mxu0 0
    %2360 = vmatpush1.bf16.msra.mxu0 0
    %2361 = vmatprep.subr.bf16.mxu0 0
    %2362 = vmatpush1.bf16.msra.mxu0 0
    %2363 = vmatprep.subr.bf16.mxu0 0
    %2364 = vmatpush1.bf16.msra.mxu0 0
    %2365 = vmatprep.subr.bf16.mxu0 0
    %2366 = vmatpush1.bf16.msra.mxu0 0
    %2367 = vmatprep.subr.bf16.mxu0 0
    %2368 = vmatpush1.bf16.msra.mxu0 0
    %2369 = vmatprep.subr.bf16.mxu0 0
    %2370 = vmatpush1.bf16.msra.mxu0 0
    %2371 = vmatprep.subr.bf16.mxu0 0
    %2372 = vmatpush1.bf16.msra.mxu0 0
    %2373 = vmatprep.subr.bf16.mxu0 0
    %2374 = vmatpush1.bf16.msra.mxu0 %v2351
    %2375 = vmatprep.subr.bf16.mxu0 0
    %2376 = vmatpush2.bf16.msra.mxu0 0
    %2377 = vmatprep.subr.bf16.mxu0 0
    %2378 = vmatpush2.bf16.msra.mxu0 0
    %2379 = vmatprep.subr.bf16.mxu0 0
    %2380 = vmatpush2.bf16.msra.mxu0 0
    %2381 = vmatprep.subr.bf16.mxu0 0
    %2382 = vmatpush2.bf16.msra.mxu0 0
    %2383 = vmatprep.subr.bf16.mxu0 0
    %2384 = vmatpush2.bf16.msra.mxu0 0
    %2385 = vmatprep.subr.bf16.mxu0 0
    %2386 = vmatpush2.bf16.msra.mxu0 0
    %2387 = vmatprep.subr.bf16.mxu0 0
    %2388 = vmatpush2.bf16.msra.mxu0 0
    %2389 = vmatprep.subr.bf16.mxu0 0
    %2390 = vmatpush2.bf16.msra.mxu0 0
    %2391 = vmatprep.mubr.bf16.mxu0 0
    %2392 = vmatmul.mubr.bf16.gmra.mxu0 %v2357
    %v2393 = vpop.f32.mrf.mxu0
    %v2394 = vadd.f32 %v2355, %v2393
    %v2395 = vpop.f32.mrf.mxu0
    %v2396 = vpop.f32.mrf.mxu0
    %v2397 = vadd.f32 %v2355, %v2396
    %v2398 = vpop.f32.mrf.mxu0
    %2399 = vdwg.mxu0
    %v2400 = vld [vmem:[#allocation2 + $0x28] sm:$0xf]
    %v2401 = vld [vmem:[#allocation2 + $0x2c] sm:$0xf]
    %v2402 = vld [vmem:[#allocation2 + $0x30] sm:$0xf]
    %v2403 = vld [vmem:[#allocation2 + $0x34] sm:$0xf]
    %v2404 = vld [vmem:[#allocation5 + $0x9] sm:$0x1]
    %v2405 = vpack.c.bf16 %v2397, %v2394
    %v2406 = vlaneseq
    %v2407 = vshrl.u32 %v2406, 7
    %v2408 = vsub.s32 0, %v2407
    %v2409 = vrot.slane %v2404, %v2408
    %v2414 = vunpack.c.l.b16 %v2400
    %v2415 = vunpack.c.l.b16 %v2401
    %v2416 = vunpack.c.l.b16 %v2402
    %v2417 = vunpack.c.l.b16 %v2403
    %v2418 = vpack.c.b16 %v2415, %v2414
    %v2419 = vpack.c.b16 %v2417, %v2416
    %v2423 = vsel %vm453, %v2405, 0
    %2425 = vmatprep.subr.bf16.mxu0 0
    %2426 = vmatpush1.bf16.msra.mxu0 0
    %2427 = vmatprep.subr.bf16.mxu0 0
    %2428 = vmatpush1.bf16.msra.mxu0 0
    %2429 = vmatprep.subr.bf16.mxu0 0
    %2430 = vmatpush1.bf16.msra.mxu0 0
    %2431 = vmatprep.subr.bf16.mxu0 0
    %2432 = vmatpush1.bf16.msra.mxu0 0
    %2433 = vmatprep.subr.bf16.mxu0 0
    %2434 = vmatpush1.bf16.msra.mxu0 0
    %2435 = vmatprep.subr.bf16.mxu0 0
    %2436 = vmatpush1.bf16.msra.mxu0 0
    %2437 = vmatprep.subr.bf16.mxu0 0
    %2438 = vmatpush1.bf16.msra.mxu0 %v2419
    %2439 = vmatprep.subr.bf16.mxu0 0
    %2440 = vmatpush1.bf16.msra.mxu0 %v2418
    %2441 = vmatprep.subr.bf16.mxu0 0
    %2442 = vmatpush2.bf16.msra.mxu0 0
    %2443 = vmatprep.subr.bf16.mxu0 0
    %2444 = vmatpush2.bf16.msra.mxu0 0
    %2445 = vmatprep.subr.bf16.mxu0 0
    %2446 = vmatpush2.bf16.msra.mxu0 0
    %2447 = vmatprep.subr.bf16.mxu0 0
    %2448 = vmatpush2.bf16.msra.mxu0 0
    %2449 = vmatprep.subr.bf16.mxu0 0
    %2450 = vmatpush2.bf16.msra.mxu0 0
    %2451 = vmatprep.subr.bf16.mxu0 0
    %2452 = vmatpush2.bf16.msra.mxu0 0
    %2453 = vmatprep.subr.bf16.mxu0 0
    %2454 = vmatpush2.bf16.msra.mxu0 0
    %2455 = vmatprep.subr.bf16.mxu0 0
    %2456 = vmatpush2.bf16.msra.mxu0 0
    %2457 = vmatprep.mubr.bf16.mxu0 0
    %2458 = vmatmul.mubr.bf16.gmra.mxu0 %v2423
    %v2459 = vpop.f32.mrf.mxu0
    %v2460 = vadd.f32 %v2409, %v2459
    %v2461 = vpop.f32.mrf.mxu0
    %v2462 = vpop.f32.mrf.mxu0
    %v2463 = vadd.f32 %v2409, %v2462
    %v2464 = vpop.f32.mrf.mxu0
    %2465 = vdwg.mxu0
    %v2466 = vmax.f32 %v2460, 0.0
    %v2467 = vmax.f32 %v2463, 0.0
    %v2468 = vld [vmem:[#allocation2 + $0x38] sm:$0xf]
    %v2469 = vld [vmem:[#allocation2 + $0x3c] sm:$0xf]
    %v2470 = vld [vmem:[#allocation2 + $0x40] sm:$0xf]
    %v2471 = vld [vmem:[#allocation2 + $0x44] sm:$0xf]
    %v2472 = vld [vmem:[#allocation5 + $0xa] sm:$0x1]
    %v2473 = vpack.c.bf16 %v2467, %v2466
    %v2474 = vlaneseq
    %v2475 = vshrl.u32 %v2474, 7
    %v2476 = vsub.s32 0, %v2475
    %v2477 = vrot.slane %v2472, %v2476
    %v2482 = vunpack.c.l.b16 %v2468
    %v2483 = vunpack.c.l.b16 %v2469
    %v2484 = vunpack.c.l.b16 %v2470
    %v2485 = vunpack.c.l.b16 %v2471
    %v2486 = vpack.c.b16 %v2483, %v2482
    %v2487 = vpack.c.b16 %v2485, %v2484
    %v2491 = vsel %vm453, %v2473, 0
    %2493 = vmatprep.subr.bf16.mxu0 0
    %2494 = vmatpush1.bf16.msra.mxu0 0
    %2495 = vmatprep.subr.bf16.mxu0 0
    %2496 = vmatpush1.bf16.msra.mxu0 0
    %2497 = vmatprep.subr.bf16.mxu0 0
    %2498 = vmatpush1.bf16.msra.mxu0 0
    %2499 = vmatprep.subr.bf16.mxu0 0
    %2500 = vmatpush1.bf16.msra.mxu0 0
    %2501 = vmatprep.subr.bf16.mxu0 0
    %2502 = vmatpush1.bf16.msra.mxu0 0
    %2503 = vmatprep.subr.bf16.mxu0 0
    %2504 = vmatpush1.bf16.msra.mxu0 0
    %2505 = vmatprep.subr.bf16.mxu0 0
    %2506 = vmatpush1.bf16.msra.mxu0 %v2487
    %2507 = vmatprep.subr.bf16.mxu0 0
    %2508 = vmatpush1.bf16.msra.mxu0 %v2486
    %2509 = vmatprep.subr.bf16.mxu0 0
    %2510 = vmatpush2.bf16.msra.mxu0 0
    %2511 = vmatprep.subr.bf16.mxu0 0
    %2512 = vmatpush2.bf16.msra.mxu0 0
    %2513 = vmatprep.subr.bf16.mxu0 0
    %2514 = vmatpush2.bf16.msra.mxu0 0
    %2515 = vmatprep.subr.bf16.mxu0 0
    %2516 = vmatpush2.bf16.msra.mxu0 0
    %2517 = vmatprep.subr.bf16.mxu0 0
    %2518 = vmatpush2.bf16.msra.mxu0 0
    %2519 = vmatprep.subr.bf16.mxu0 0
    %2520 = vmatpush2.bf16.msra.mxu0 0
    %2521 = vmatprep.subr.bf16.mxu0 0
    %2522 = vmatpush2.bf16.msra.mxu0 0
    %2523 = vmatprep.subr.bf16.mxu0 0
    %2524 = vmatpush2.bf16.msra.mxu0 0
    %2525 = vmatprep.mubr.bf16.mxu0 0
    %2526 = vmatmul.mubr.bf16.gmra.mxu0 %v2491
    %v2527 = vpop.f32.mrf.mxu0
    %v2528 = vadd.f32 %v2477, %v2527
    %v2529 = vpop.f32.mrf.mxu0
    %v2530 = vpop.f32.mrf.mxu0
    %v2531 = vadd.f32 %v2477, %v2530
    %v2532 = vpop.f32.mrf.mxu0
    %2533 = vdwg.mxu0
    %v2534 = vmax.f32 %v2528, 0.0
    %v2535 = vmax.f32 %v2531, 0.0
    %v2536 = vld [vmem:[#allocation2 + $0x48] sm:$0xf]
    %v2537 = vld [vmem:[#allocation2 + $0x4c] sm:$0xf]
    %v2538 = vld [vmem:[#allocation2 + $0x50] sm:$0xf]
    %v2539 = vld [vmem:[#allocation2 + $0x54] sm:$0xf]
    %v2540 = vld [vmem:[#allocation5 + $0xb] sm:$0x1]
    %v2541 = vpack.c.bf16 %v2535, %v2534
    %v2542 = vlaneseq
    %v2543 = vshrl.u32 %v2542, 7
    %v2544 = vsub.s32 0, %v2543
    %v2545 = vrot.slane %v2540, %v2544
    %v2550 = vunpack.c.l.b16 %v2536
    %v2551 = vunpack.c.l.b16 %v2537
    %v2552 = vunpack.c.l.b16 %v2538
    %v2553 = vunpack.c.l.b16 %v2539
    %v2554 = vpack.c.b16 %v2551, %v2550
    %v2555 = vpack.c.b16 %v2553, %v2552
    %v2559 = vsel %vm453, %v2541, 0
    %2561 = vmatprep.subr.bf16.mxu0 0
    %2562 = vmatpush1.bf16.msra.mxu0 0
    %2563 = vmatprep.subr.bf16.mxu0 0
    %2564 = vmatpush1.bf16.msra.mxu0 0
    %2565 = vmatprep.subr.bf16.mxu0 0
    %2566 = vmatpush1.bf16.msra.mxu0 0
    %2567 = vmatprep.subr.bf16.mxu0 0
    %2568 = vmatpush1.bf16.msra.mxu0 0
    %2569 = vmatprep.subr.bf16.mxu0 0
    %2570 = vmatpush1.bf16.msra.mxu0 0
    %2571 = vmatprep.subr.bf16.mxu0 0
    %2572 = vmatpush1.bf16.msra.mxu0 0
    %2573 = vmatprep.subr.bf16.mxu0 0
    %2574 = vmatpush1.bf16.msra.mxu0 %v2555
    %2575 = vmatprep.subr.bf16.mxu0 0
    %2576 = vmatpush1.bf16.msra.mxu0 %v2554
    %2577 = vmatprep.subr.bf16.mxu0 0
    %2578 = vmatpush2.bf16.msra.mxu0 0
    %2579 = vmatprep.subr.bf16.mxu0 0
    %2580 = vmatpush2.bf16.msra.mxu0 0
    %2581 = vmatprep.subr.bf16.mxu0 0
    %2582 = vmatpush2.bf16.msra.mxu0 0
    %2583 = vmatprep.subr.bf16.mxu0 0
    %2584 = vmatpush2.bf16.msra.mxu0 0
    %2585 = vmatprep.subr.bf16.mxu0 0
    %2586 = vmatpush2.bf16.msra.mxu0 0
    %2587 = vmatprep.subr.bf16.mxu0 0
    %2588 = vmatpush2.bf16.msra.mxu0 0
    %2589 = vmatprep.subr.bf16.mxu0 0
    %2590 = vmatpush2.bf16.msra.mxu0 0
    %2591 = vmatprep.subr.bf16.mxu0 0
    %2592 = vmatpush2.bf16.msra.mxu0 0
    %2593 = vmatprep.mubr.bf16.mxu0 0
    %2594 = vmatmul.mubr.bf16.gmra.mxu0 %v2559
    %v2595 = vpop.f32.mrf.mxu0
    %v2596 = vadd.f32 %v2545, %v2595
    %v2597 = vpop.f32.mrf.mxu0
    %v2598 = vpop.f32.mrf.mxu0
    %v2599 = vadd.f32 %v2545, %v2598
    %v2600 = vpop.f32.mrf.mxu0
    %2601 = vdwg.mxu0
    %2602 = vst [vmem:[#allocation7] sm:$0xff] %v2596
    %2603 = vst [vmem:[#allocation7 + $0x8] sm:$0xff] %v2599
    // Predicated region
    $region26: #{forward.1} parent=1 // pred_check
      _
    $region27: #{forward.1} parent=1 // pred_check_branch
      %2605 = sbr.rel (0) target = $region29
    $region28: #{forward.1} parent=1 // pred_region
      %s2607 = ssub.s32 256, 256
      %2608 = vsyncadd [#allocation4], %s2607
      %s2609 = sshll.u32 [#allocation7], 4
      %s2610 = int_to_ptr.vmem [resolvable:$true] %s2609
      %2615 = dma.vmem_to_hbm [thread:$0]  %s2610, 256, %s4, [#allocation4], 128, 128, 8
    $region29: #{forward.1} parent=1 // pred_fallthru
      _
    // Predicated region
    $region30: #{forward.1} parent=1 // pred_check
      _
    $region31: #{forward.1} parent=1 // pred_check_branch
      %2617 = sbr.rel (0) target = $region33
    $region32: #{forward.1} parent=1 // pred_region
      %2618 = dma.done [#allocation4], 256
    $region33: #{forward.1} parent=1 // pred_fallthru
      _
    %2619 = vsyncpa [#allocation3], 1
    %2620 = vsyncpa [#allocation6], 1
    %2621 = vsyncpa [#allocation4], 1

</llo_original>
